<compile_context>
chip_gen: v5e
topology: v5e:2x2
jax: 0.10.0
libtpu: 0.0.40
codegen_flags: <defaults>
</compile_context>

<pallas_src>
import functools

import jax
import jax.numpy as jnp
import numpy as np
from jax.experimental import pallas as pl
from jax.experimental.pallas import tpu as pltpu

_LN_EPS = 1e-5


# ----------------------------------------------------------------------------
# Layout helpers (shared by the packer and the kernel)
# ----------------------------------------------------------------------------
def _rup(x, m):
    return ((x + m - 1) // m) * m


def _col_layout(entries, align=128):
    """entries: [(name, cols)] -> ({name: col_start}, total_width).
    Every segment starts on a 128-lane boundary (cheap result slicing)."""
    offs, o = {}, 0
    for name, cols in entries:
        offs[name] = o
        o = _rup(o + cols, align)
    return offs, max(o, align)


def _vsn_layout(N, I, H):
    NI, NH = N * I, N * H
    cA, WA = _col_layout([("h", NH), ("res", NH), ("hs", H), ("ress", N)])
    cB, WB = _col_layout([("out", NH), ("gate", NH)])
    cD, WD = _col_layout([("so", N), ("sg", N)])
    cE, WE = _col_layout([("sel", H), ("ho", H)])
    cF, WF = _col_layout([("oo", H), ("og", H)])
    OUTW = _rup(H + N, 128)
    mb_bc = _rup(NH, 16)          # Bcast row offset inside w_mb (bf16-friendly)
    p2 = _rup(H, 16)              # P2 row offset inside w_p
    Wv = max(WA, WB, WD, WE, WF, NH, OUTW)
    return dict(NI=NI, NH=NH, cA=cA, WA=WA, cB=cB, WB=WB, cD=cD, WD=WD,
                cE=cE, WE=WE, cF=cF, WF=WF, OUTW=OUTW, mb_bc=mb_bc, p2=p2,
                Wv=Wv)


# ----------------------------------------------------------------------------
# Pallas kernel: full VSN forward for one row-tile of [TB, N*I]
# ----------------------------------------------------------------------------
def _make_vsn_kernel(N, H, L):
    NH = L["NH"]
    cA, WA = L["cA"], L["WA"]
    cB, WB = L["cB"], L["WB"]
    cD, WD = L["cD"], L["WD"]
    cE, WE = L["cE"], L["WE"]
    cF, WF = L["cF"], L["WF"]
    OUTW = L["OUTW"]
    mb_bc, p2 = L["mb_bc"], L["p2"]
    f32, bf16 = jnp.float32, jnp.bfloat16

    def kernel(flat_ref, wA_ref, wB_ref, wMB_ref, wD_ref, wE_ref, wF_ref,
               wP_ref, vb_ref, out_ref):
        flat = flat_ref[...].astype(bf16)                      # (TB, NI)

        # ---- stage A: every matmul whose LHS is `flat`, fused --------------
        A = (jnp.dot(flat, wA_ref[...], preferred_element_type=f32)
             + vb_ref[0:1, :WA])
        h = jnp.maximum(A[:, cA["h"]:cA["h"] + NH], 0.0)       # (TB, NH)
        res_v = A[:, cA["res"]:cA["res"] + NH]                 # (TB, NH)
        hs = jnp.maximum(A[:, cA["hs"]:cA["hs"] + H], 0.0)     # (TB, H)
        ress = A[:, cA["ress"]:cA["ress"] + N]                 # (TB, N)

        # ---- per-variable GRNs: fused [W2 | Wg] on h ------------------------
        B = (jnp.dot(h.astype(bf16), wB_ref[...], preferred_element_type=f32)
             + vb_ref[3:4, :WB])
        y = res_v + (B[:, cB["out"]:cB["out"] + NH]
                     * jax.nn.sigmoid(B[:, cB["gate"]:cB["gate"] + NH]))

        # grouped LayerNorm: mean and E[y^2] via two *independent* block-avg
        # matmuls (no serialized mean -> centered-variance dependency).
        mavg = wMB_ref[0:NH, :]                                # (NH, NH) bf16
        mu = jnp.dot(y.astype(bf16), mavg, preferred_element_type=f32)
        ey2 = jnp.dot((y * y).astype(bf16), mavg, preferred_element_type=f32)
        var = jnp.maximum(ey2 - mu * mu, 0.0)
        processed = ((y - mu) * jax.lax.rsqrt(var + _LN_EPS)
                     * vb_ref[1:2, :NH] + vb_ref[2:3, :NH])    # (TB, NH)

        # ---- selection GRN tail + softmax over N variables ------------------
        D = (jnp.dot(hs.astype(bf16), wD_ref[...], preferred_element_type=f32)
             + vb_ref[4:5, :WD])
        ys = ress + (D[:, cD["so"]:cD["so"] + N]
                     * jax.nn.sigmoid(D[:, cD["sg"]:cD["sg"] + N]))
        mus = jnp.mean(ys, axis=-1, keepdims=True)
        dsl = ys - mus
        vrs = jnp.mean(dsl * dsl, axis=-1, keepdims=True)
        logits = (dsl * jax.lax.rsqrt(vrs + _LN_EPS) * vb_ref[5:6, :N]
                  + vb_ref[6:7, :N])
        # logits are LayerNorm-bounded -> exp cannot overflow; skip max-sub.
        e = jnp.exp(logits)
        w = e * pl.reciprocal(jnp.sum(e, axis=-1, keepdims=True), approx=True)

        # ---- weighted combine + output-GRN hidden, fused --------------------
        bcast = wMB_ref[mb_bc:mb_bc + N, :]                    # (N, NH)
        wbc = jnp.dot(w.astype(bf16), bcast, preferred_element_type=f32)
        pv = (processed * wbc).astype(bf16)                    # (TB, NH)
        E = (jnp.dot(pv, wE_ref[...], preferred_element_type=f32)
             + vb_ref[7:8, :WE])
        selected = E[:, cE["sel"]:cE["sel"] + H]               # einsum result
        ho = jnp.maximum(E[:, cE["ho"]:cE["ho"] + H], 0.0)     # out-GRN hidden

        # ---- output GRN tail: fused [W2 | Wg]; identity residual ------------
        F = (jnp.dot(ho.astype(bf16), wF_ref[...], preferred_element_type=f32)
             + vb_ref[8:9, :WF])
        yo = selected + (F[:, cF["oo"]:cF["oo"] + H]
                         * jax.nn.sigmoid(F[:, cF["og"]:cF["og"] + H]))
        muo = jnp.mean(yo, axis=-1, keepdims=True)
        do = yo - muo
        varo = jnp.mean(do * do, axis=-1, keepdims=True)
        fin = do * jax.lax.rsqrt(varo + _LN_EPS)   # LN scale/shift folded in P

        # ---- lane-dense packed store: [0,H)=selected, [H,H+N)=weights -------
        packed = (jnp.dot(fin.astype(bf16), wP_ref[0:H, :],
                          preferred_element_type=f32)
                  + jnp.dot(w.astype(bf16), wP_ref[p2:p2 + N, :],
                            preferred_element_type=f32)
                  + vb_ref[9:10, :OUTW])
        out_ref[...] = packed.astype(out_ref.dtype)

    return kernel


# ----------------------------------------------------------------------------
# Parameter construction (deterministic, mimics nn.Linear / nn.LayerNorm init)
# ----------------------------------------------------------------------------
def _init_linear(key, in_dim, out_dim):
    k1, k2 = jax.random.split(key)
    bound = 1.0 / np.sqrt(in_dim)
    W = jax.random.uniform(k1, (in_dim, out_dim), jnp.float32, -bound, bound)
    b = jax.random.uniform(k2, (1, out_dim), jnp.float32, -bound, bound)
    return W, b


def _init_grn(key, input_size, hidden_size, output_size):
    k1, k2, k3, k4 = jax.random.split(key, 4)
    W1, b1 = _init_linear(k1, input_size, hidden_size)
    W2, b2 = _init_linear(k2, hidden_size, output_size)
    Wg, bg = _init_linear(k3, hidden_size, output_size)
    has_skip = input_size != output_size
    if has_skip:
        Ws, bs = _init_linear(k4, input_size, output_size)
    else:  # placeholders (unused when has_skip=False)
        Ws = jnp.zeros((input_size, output_size), jnp.float32)
        bs = jnp.zeros((1, output_size), jnp.float32)
    ln_w = jnp.ones((1, output_size), jnp.float32)
    ln_b = jnp.zeros((1, output_size), jnp.float32)
    return dict(W1=W1, b1=b1, W2=W2, b2=b2, Wg=Wg, bg=bg,
                Ws=Ws, bs=bs, ln_w=ln_w, ln_b=ln_b, has_skip=has_skip)


def init_vsn_params(key, input_size, num_inputs, hidden_size):
    keys = jax.random.split(key, num_inputs + 2)
    var_grns = [_init_grn(keys[i], input_size, hidden_size, hidden_size)
                for i in range(num_inputs)]
    sel_grn = _init_grn(keys[num_inputs], input_size * num_inputs, hidden_size,
                        num_inputs)
    out_grn = _init_grn(keys[num_inputs + 1], hidden_size, hidden_size,
                        hidden_size)

    def stack(name):
        return jnp.stack([g[name] for g in var_grns], axis=0)

    return dict(
        vg=dict(W1=stack("W1"), b1=stack("b1"), W2=stack("W2"), b2=stack("b2"),
                Wg=stack("Wg"), bg=stack("bg"), Ws=stack("Ws"), bs=stack("bs"),
                ln_w=stack("ln_w"), ln_b=stack("ln_b"),
                has_skip=var_grns[0]["has_skip"]),
        sel=sel_grn,
        out=out_grn,
    )


# ----------------------------------------------------------------------------
# Pack raw per-GRN parameters into the fused bf16 slabs + f32 bias slab
# ----------------------------------------------------------------------------
def pack_vsn_params(params, input_size, num_inputs, hidden_size):
    I, N, H = input_size, num_inputs, hidden_size
    NI, NH = N * I, N * H
    L = _vsn_layout(N, I, H)
    vg, sg, og = params["vg"], params["sel"], params["out"]

    def npf(x):
        return np.asarray(x, dtype=np.float32)

    def block_diag(mats):
        a, b = mats[0].shape
        out = np.zeros((len(mats) * a, len(mats) * b), np.float32)
        for k, m in enumerate(mats):
            out[k * a:(k + 1) * a, k * b:(k + 1) * b] = m
        return out

    vW1, vW2, vWg = npf(vg["W1"]), npf(vg["W2"]), npf(vg["Wg"])
    if vg["has_skip"]:
        vWs, vbs = npf(vg["Ws"]), npf(vg["bs"]).reshape(NH)
    else:  # input_size == hidden_size -> identity residual
        vWs = np.stack([np.eye(I, H, dtype=np.float32)] * N, axis=0)
        vbs = np.zeros((NH,), np.float32)
    if sg["has_skip"]:
        sWs, sbs = npf(sg["Ws"]), npf(sg["bs"]).reshape(N)
    else:  # NI == N -> identity residual
        sWs, sbs = np.eye(NI, N, dtype=np.float32), np.zeros((N,), np.float32)

    cA, WA = L["cA"], L["WA"]
    cB, WB = L["cB"], L["WB"]
    cD, WD = L["cD"], L["WD"]
    cE, WE = L["cE"], L["WE"]
    cF, WF = L["cF"], L["WF"]
    OUTW = L["OUTW"]

    # Stage A: shared-LHS (flat) weights.
    wA = np.zeros((NI, WA), np.float32)
    wA[:, cA["h"]:cA["h"] + NH] = block_diag([vW1[n] for n in range(N)])
    wA[:, cA["res"]:cA["res"] + NH] = block_diag([vWs[n] for n in range(N)])
    wA[:, cA["hs"]:cA["hs"] + H] = npf(sg["W1"])
    wA[:, cA["ress"]:cA["ress"] + N] = sWs

    # Stage B: shared-LHS (h) weights.
    wB = np.zeros((NH, WB), np.float32)
    wB[:, cB["out"]:cB["out"] + NH] = block_diag([vW2[n] for n in range(N)])
    wB[:, cB["gate"]:cB["gate"] + NH] = block_diag([vWg[n] for n in range(N)])

    # Grouped-mean + weight-broadcast matrices (width NH, stacked rows).
    wMB = np.zeros((L["mb_bc"] + N, NH), np.float32)
    wMB[0:NH, :] = block_diag([np.full((H, H), 1.0 / H, np.float32)] * N)
    for n in range(N):
        wMB[L["mb_bc"] + n, n * H:(n + 1) * H] = 1.0

    # Stage D: selection GRN tail.
    wD = np.zeros((H, WD), np.float32)
    wD[:, cD["so"]:cD["so"] + N] = npf(sg["W2"])
    wD[:, cD["sg"]:cD["sg"] + N] = npf(sg["Wg"])

    # Stage E: weighted combine + output-GRN hidden, fused.
    wE = np.zeros((NH, WE), np.float32)
    wE[:, cE["sel"]:cE["sel"] + H] = np.tile(np.eye(H, dtype=np.float32),
                                             (N, 1))
    wE[:, cE["ho"]:cE["ho"] + H] = np.tile(npf(og["W1"]), (N, 1))

    # Stage F: output GRN tail.
    wF = np.zeros((H, WF), np.float32)
    wF[:, cF["oo"]:cF["oo"] + H] = npf(og["W2"])
    wF[:, cF["og"]:cF["og"] + H] = npf(og["Wg"])

    # Placement matrices; output-GRN LayerNorm scale folded into P1.
    wP = np.zeros((L["p2"] + N, OUTW), np.float32)
    olnw = npf(og["ln_w"]).reshape(H)
    wP[np.arange(H), np.arange(H)] = olnw
    for n in range(N):
        wP[L["p2"] + n, H + n] = 1.0

    # f32 bias / LayerNorm-vector slab (one row per vector, zero padded).
    vb = np.zeros((16, L["Wv"]), np.float32)
    vb[0, cA["h"]:cA["h"] + NH] = npf(vg["b1"]).reshape(NH)
    vb[0, cA["res"]:cA["res"] + NH] = vbs
    vb[0, cA["hs"]:cA["hs"] + H] = npf(sg["b1"]).reshape(H)
    vb[0, cA["ress"]:cA["ress"] + N] = sbs
    vb[1, :NH] = npf(vg["ln_w"]).reshape(NH)
    vb[2, :NH] = npf(vg["ln_b"]).reshape(NH)
    vb[3, cB["out"]:cB["out"] + NH] = npf(vg["b2"]).reshape(NH)
    vb[3, cB["gate"]:cB["gate"] + NH] = npf(vg["bg"]).reshape(NH)
    vb[4, cD["so"]:cD["so"] + N] = npf(sg["b2"]).reshape(N)
    vb[4, cD["sg"]:cD["sg"] + N] = npf(sg["bg"]).reshape(N)
    vb[5, :N] = npf(sg["ln_w"]).reshape(N)
    vb[6, :N] = npf(sg["ln_b"]).reshape(N)
    vb[7, cE["ho"]:cE["ho"] + H] = npf(og["b1"]).reshape(H)
    vb[8, cF["oo"]:cF["oo"] + H] = npf(og["b2"]).reshape(H)
    vb[8, cF["og"]:cF["og"] + H] = npf(og["bg"]).reshape(H)
    vb[9, :H] = npf(og["ln_b"]).reshape(H)      # olnb (olnw folded into wP)

    tobf = lambda a: jnp.asarray(a, dtype=jnp.bfloat16)
    return dict(w_a=tobf(wA), w_b=tobf(wB), w_mb=tobf(wMB), w_d=tobf(wD),
                w_e=tobf(wE), w_f=tobf(wF), w_p=tobf(wP),
                v_bias=jnp.asarray(vb, dtype=jnp.float32))


# ----------------------------------------------------------------------------
# Tiling choice: bounded tail waste, >=2 grid steps for v7x/megacore,
# per-tile f32 intermediates capped (~8 MiB) for v7x's 64 MiB VMEM.
# ----------------------------------------------------------------------------
def _choose_tiling(rows, row_tile, per_row_bytes):
    cap = max(64, ((8 << 20) // max(per_row_bytes, 1)) // 8 * 8)
    row_tile = max(8, min(row_tile, cap))
    n_tiles = max(-(-rows // row_tile), 1)
    if n_tiles < 2 and rows >= 16:
        n_tiles = 2
    tb = _rup(-(-rows // n_tiles), 8)
    if tb >= rows:
        return rows, 1            # single full block (exempt from 8-row rule)
    return tb, -(-rows // tb)


# ----------------------------------------------------------------------------
# Wrapper
# ----------------------------------------------------------------------------
def variable_selection_network(variables, packed, input_size, num_inputs,
                               hidden_size, row_tile=512):
    """variables: [B, S, N, I] or [B, N, I] -> (selected, weights)."""
    I, N, H = input_size, num_inputs, hidden_size
    L = _vsn_layout(N, I, H)
    NI, NH, OUTW = L["NI"], L["NH"], L["OUTW"]

    has_time = variables.ndim == 4
    if has_time:
        Bsz, S = variables.shape[0], variables.shape[1]
        rows = Bsz * S
    else:
        Bsz, S = variables.shape[0], None
        rows = Bsz
    flat = variables.reshape(rows, NI).astype(jnp.float32)

    per_row_bytes = 4 * (L["WA"] + L["WB"] + 4 * NH + L["WD"] + L["WE"]
                         + L["WF"] + OUTW + 64)
    TB, grid_n = _choose_tiling(rows, row_tile, per_row_bytes)

    slabs = [packed["w_a"], packed["w_b"], packed["w_mb"], packed["w_d"],
             packed["w_e"], packed["w_f"], packed["w_p"], packed["v_bias"]]
    slab_bytes = sum(int(a.size) * a.dtype.itemsize for a in slabs)

    vmem_est = (2 * TB * (NI + OUTW) * 4 + 2 * slab_bytes
                + TB * per_row_bytes + (2 << 20))
    vmem_limit = int(min(max(vmem_est, 32 << 20), 60 << 20))

    flops = 2 * rows * (NI * L["WA"] + NH * L["WB"] + 2 * NH * NH
                        + H * L["WD"] + N * NH + NH * L["WE"] + H * L["WF"]
                        + (H + N) * OUTW)
    cost = pl.CostEstimate(
        flops=int(flops),
        transcendentals=int(rows * (2 * NH + 3 * N + 3 * H)),
        bytes_accessed=int(rows * (NI + OUTW) * 4 + slab_bytes))

    def whole(arr):
        return pl.BlockSpec(arr.shape, lambda i: (0, 0))

    kernel = _make_vsn_kernel(N, H, L)

    out = pl.pallas_call(
        kernel,
        out_shape=jax.ShapeDtypeStruct((rows, OUTW), jnp.float32),
        grid_spec=pltpu.PrefetchScalarGridSpec(
            num_scalar_prefetch=0,
            grid=(grid_n,),
            in_specs=[pl.BlockSpec((TB, NI), lambda i: (i, 0))]
                     + [whole(a) for a in slabs],
            out_specs=pl.BlockSpec((TB, OUTW), lambda i: (i, 0)),
        ),
        compiler_params=pltpu.CompilerParams(
            dimension_semantics=("parallel",),
            vmem_limit_bytes=vmem_limit),
        cost_estimate=cost,
    )(flat, *slabs)

    selected = out[:, :H]
    weights = out[:, H:H + N]
    if has_time:
        selected = selected.reshape(Bsz, S, H)
        weights = weights.reshape(Bsz, S, N)
    return selected, weights


# ----------------------------------------------------------------------------
# Pure-JAX reference (mirrors the PyTorch forward exactly) for verification
# ----------------------------------------------------------------------------
def _grn_ref(x, g, eps=_LN_EPS):
    h = jax.nn.relu(x @ g["W1"] + g["b1"])
    out = h @ g["W2"] + g["b2"]
    gate = jax.nn.sigmoid(h @ g["Wg"] + g["bg"])
    gated = out * gate
    res = (x @ g["Ws"] + g["bs"]) if g["has_skip"] else x
    y = gated + res
    mu = jnp.mean(y, -1, keepdims=True)
    var = jnp.mean((y - mu) ** 2, -1, keepdims=True)
    return (y - mu) / jnp.sqrt(var + eps) * g["ln_w"] + g["ln_b"]


def vsn_reference(variables, params, input_size, num_inputs, hidden_size):
    has_time = variables.ndim == 4
    if has_time:
        B, S = variables.shape[:2]
        v = variables.reshape(B * S, num_inputs, input_size)
    else:
        v = variables
    vg = params["vg"]
    processed = []
    for n in range(num_inputs):
        g = {k: (vg[k][n] if k != "has_skip" else vg[k]) for k in vg}
        processed.append(_grn_ref(v[:, n, :], g))
    processed = jnp.stack(processed, axis=1)                      # (R, N, H)
    flat = v.reshape(v.shape[0], -1)
    w = jax.nn.softmax(_grn_ref(flat, params["sel"]), axis=-1)    # (R, N)
    selected = jnp.einsum("bnh,bn->bh", processed, w)
    selected = _grn_ref(selected, params["out"])
    if has_time:
        selected = selected.reshape(B, S, hidden_size)
        w = w.reshape(B, S, num_inputs)
    return selected, w


# ----------------------------------------------------------------------------
if __name__ == "__main__":
    batch, seq_len = 2, 8
    num_inputs, input_size, hidden_size = 4, 8, 32

    key = jax.random.PRNGKey(0)
    k_params, k_data = jax.random.split(key)
    params = init_vsn_params(k_params, input_size, num_inputs, hidden_size)
    packed = pack_vsn_params(params, input_size, num_inputs, hidden_size)

    variables = jax.random.normal(
        k_data, (batch, seq_len, num_inputs, input_size), jnp.float32)

    selected, weights = variable_selection_network(
        variables, packed, input_size, num_inputs, hidden_size)
    selected = jax.block_until_ready(selected)
    weights = jax.block_until_ready(weights)

    ref_sel, ref_w = vsn_reference(variables, params, input_size, num_inputs,
                                   hidden_size)

    assert selected.shape == (batch, seq_len, hidden_size)
    assert weights.shape == (batch, seq_len, num_inputs)
    # bf16 MXU operands (f32 accumulation) + approx softmax reciprocal:
    # compare against the pure-f32 reference with a loosened tolerance.
    np.testing.assert_allclose(np.asarray(selected), np.asarray(ref_sel),
                               rtol=5e-2, atol=5e-2)
    np.testing.assert_allclose(np.asarray(weights), np.asarray(ref_w),
                               rtol=5e-2, atol=5e-2)
    print("KERNEL_OK")
</pallas_src>

<mosaic_0001>
module attributes {stable_mosaic.version = 11 : i64} {
  func.func @kernel(%arg0: i32, %arg1: memref<8x32xf32, #tpu.memory_space<vmem>>, %arg2: memref<32x512xbf16, #tpu.memory_space<vmem>>, %arg3: memref<128x256xbf16, #tpu.memory_space<vmem>>, %arg4: memref<132x128xbf16, #tpu.memory_space<vmem>>, %arg5: memref<32x256xbf16, #tpu.memory_space<vmem>>, %arg6: memref<128x256xbf16, #tpu.memory_space<vmem>>, %arg7: memref<32x256xbf16, #tpu.memory_space<vmem>>, %arg8: memref<36x128xbf16, #tpu.memory_space<vmem>>, %arg9: memref<16x512xf32, #tpu.memory_space<vmem>>, %arg10: memref<8x128xf32, #tpu.memory_space<vmem>>) attributes {dimension_semantics = [#tpu.dimension_semantics<parallel>], iteration_bounds = array<i64: 2>, scalar_prefetch = 0 : i64, scratch_operands = 0 : i64, tpu.core_type = #tpu.core_type<tc>, window_params = [{transform_indices = @transform_0, window_bounds = array<i64: 8, 32>}, {pipeline_mode = #tpu.pipeline_mode<synchronous>, transform_indices = @transform_1, window_bounds = array<i64: 32, 512>}, {pipeline_mode = #tpu.pipeline_mode<synchronous>, transform_indices = @transform_2, window_bounds = array<i64: 128, 256>}, {pipeline_mode = #tpu.pipeline_mode<synchronous>, transform_indices = @transform_3, window_bounds = array<i64: 132, 128>}, {pipeline_mode = #tpu.pipeline_mode<synchronous>, transform_indices = @transform_4, window_bounds = array<i64: 32, 256>}, {pipeline_mode = #tpu.pipeline_mode<synchronous>, transform_indices = @transform_5, window_bounds = array<i64: 128, 256>}, {pipeline_mode = #tpu.pipeline_mode<synchronous>, transform_indices = @transform_6, window_bounds = array<i64: 32, 256>}, {pipeline_mode = #tpu.pipeline_mode<synchronous>, transform_indices = @transform_7, window_bounds = array<i64: 36, 128>}, {pipeline_mode = #tpu.pipeline_mode<synchronous>, transform_indices = @transform_8, window_bounds = array<i64: 16, 512>}, {transform_indices = @transform_9, window_bounds = array<i64: 8, 128>}]} {
    %c0 = arith.constant 0 : index
    %c0_0 = arith.constant 0 : index
    %0 = vector.load %arg1[%c0, %c0_0] : memref<8x32xf32, #tpu.memory_space<vmem>>, vector<8x32xf32>
    %1 = arith.truncf %0 : vector<8x32xf32> to vector<8x32xbf16>
    %c0_1 = arith.constant 0 : index
    %c0_2 = arith.constant 0 : index
    %2 = vector.load %arg2[%c0_1, %c0_2] : memref<32x512xbf16, #tpu.memory_space<vmem>>, vector<32x512xbf16>
    %cst = arith.constant dense<0.000000e+00> : vector<8x512xf32>
    %3 = tpu.matmul %1, %2, %cst {dimension_numbers = #tpu.dot_dimension_numbers<[1], [0], [0], [1], [0, 0, 1, 1], [], []>} : vector<8x32xbf16>, vector<32x512xbf16>, vector<8x512xf32> -> vector<8x512xf32>
    %c0_3 = arith.constant 0 : index
    %c0_4 = arith.constant 0 : index
    %4 = vector.load %arg9[%c0_3, %c0_4] : memref<16x512xf32, #tpu.memory_space<vmem>>, vector<1x512xf32>
    %5 = vector.broadcast %4 : vector<1x512xf32> to vector<8x512xf32>
    %6 = arith.addf %3, %5 : vector<8x512xf32>
    %7 = vector.extract_strided_slice %6 {offsets = [0, 0], sizes = [8, 128], strides = [1, 1]} : vector<8x512xf32> to vector<8x128xf32>
    %cst_5 = arith.constant 0.000000e+00 : f32
    %8 = vector.broadcast %cst_5 : f32 to vector<8x128xf32>
    %9 = arith.maximumf %7, %8 : vector<8x128xf32>
    %10 = vector.extract_strided_slice %6 {offsets = [0, 128], sizes = [8, 128], strides = [1, 1]} : vector<8x512xf32> to vector<8x128xf32>
    %11 = vector.extract_strided_slice %6 {offsets = [0, 256], sizes = [8, 32], strides = [1, 1]} : vector<8x512xf32> to vector<8x32xf32>
    %cst_6 = arith.constant 0.000000e+00 : f32
    %12 = vector.broadcast %cst_6 : f32 to vector<8x32xf32>
    %13 = arith.maximumf %11, %12 : vector<8x32xf32>
    %14 = vector.extract_strided_slice %6 {offsets = [0, 384], sizes = [8, 4], strides = [1, 1]} : vector<8x512xf32> to vector<8x4xf32>
    %15 = arith.truncf %9 : vector<8x128xf32> to vector<8x128xbf16>
    %c0_7 = arith.constant 0 : index
    %c0_8 = arith.constant 0 : index
    %16 = vector.load %arg3[%c0_7, %c0_8] : memref<128x256xbf16, #tpu.memory_space<vmem>>, vector<128x256xbf16>
    %cst_9 = arith.constant dense<0.000000e+00> : vector<8x256xf32>
    %17 = tpu.matmul %15, %16, %cst_9 {dimension_numbers = #tpu.dot_dimension_numbers<[1], [0], [0], [1], [0, 0, 1, 1], [], []>} : vector<8x128xbf16>, vector<128x256xbf16>, vector<8x256xf32> -> vector<8x256xf32>
    %c3 = arith.constant 3 : index
    %c0_10 = arith.constant 0 : index
    %18 = vector.load %arg9[%c3, %c0_10] : memref<16x512xf32, #tpu.memory_space<vmem>>, vector<1x256xf32>
    %19 = vector.broadcast %18 : vector<1x256xf32> to vector<8x256xf32>
    %20 = arith.addf %17, %19 : vector<8x256xf32>
    %21 = vector.extract_strided_slice %20 {offsets = [0, 0], sizes = [8, 128], strides = [1, 1]} : vector<8x256xf32> to vector<8x128xf32>
    %22 = vector.extract_strided_slice %20 {offsets = [0, 128], sizes = [8, 128], strides = [1, 1]} : vector<8x256xf32> to vector<8x128xf32>
    %23 = arith.negf %22 : vector<8x128xf32>
    %24 = math.exp %23 : vector<8x128xf32>
    %cst_11 = arith.constant 1.000000e+00 : f32
    %25 = vector.broadcast %cst_11 : f32 to vector<8x128xf32>
    %26 = arith.addf %25, %24 : vector<8x128xf32>
    %27 = arith.divf %25, %26 : vector<8x128xf32>
    %28 = arith.mulf %21, %27 : vector<8x128xf32>
    %29 = arith.addf %10, %28 : vector<8x128xf32>
    %c0_12 = arith.constant 0 : index
    %c0_13 = arith.constant 0 : index
    %30 = vector.load %arg4[%c0_12, %c0_13] : memref<132x128xbf16, #tpu.memory_space<vmem>>, vector<128x128xbf16>
    %31 = arith.truncf %29 : vector<8x128xf32> to vector<8x128xbf16>
    %cst_14 = arith.constant dense<0.000000e+00> : vector<8x128xf32>
    %32 = tpu.matmul %31, %30, %cst_14 {dimension_numbers = #tpu.dot_dimension_numbers<[1], [0], [0], [1], [0, 0, 1, 1], [], []>} : vector<8x128xbf16>, vector<128x128xbf16>, vector<8x128xf32> -> vector<8x128xf32>
    %33 = arith.mulf %29, %29 : vector<8x128xf32>
    %34 = arith.truncf %33 : vector<8x128xf32> to vector<8x128xbf16>
    %cst_15 = arith.constant dense<0.000000e+00> : vector<8x128xf32>
    %35 = tpu.matmul %34, %30, %cst_15 {dimension_numbers = #tpu.dot_dimension_numbers<[1], [0], [0], [1], [0, 0, 1, 1], [], []>} : vector<8x128xbf16>, vector<128x128xbf16>, vector<8x128xf32> -> vector<8x128xf32>
    %36 = arith.mulf %32, %32 : vector<8x128xf32>
    %37 = arith.subf %35, %36 : vector<8x128xf32>
    %cst_16 = arith.constant 0.000000e+00 : f32
    %38 = vector.broadcast %cst_16 : f32 to vector<8x128xf32>
    %39 = arith.maximumf %37, %38 : vector<8x128xf32>
    %40 = arith.subf %29, %32 : vector<8x128xf32>
    %cst_17 = arith.constant 9.99999974E-6 : f32
    %41 = vector.broadcast %cst_17 : f32 to vector<8x128xf32>
    %42 = arith.addf %39, %41 : vector<8x128xf32>
    %43 = math.rsqrt %42 : vector<8x128xf32>
    %44 = arith.mulf %40, %43 : vector<8x128xf32>
    %c1 = arith.constant 1 : index
    %c0_18 = arith.constant 0 : index
    %45 = vector.load %arg9[%c1, %c0_18] : memref<16x512xf32, #tpu.memory_space<vmem>>, vector<1x128xf32>
    %46 = vector.broadcast %45 : vector<1x128xf32> to vector<8x128xf32>
    %47 = arith.mulf %44, %46 : vector<8x128xf32>
    %c2 = arith.constant 2 : index
    %c0_19 = arith.constant 0 : index
    %48 = vector.load %arg9[%c2, %c0_19] : memref<16x512xf32, #tpu.memory_space<vmem>>, vector<1x128xf32>
    %49 = vector.broadcast %48 : vector<1x128xf32> to vector<8x128xf32>
    %50 = arith.addf %47, %49 : vector<8x128xf32>
    %51 = arith.truncf %13 : vector<8x32xf32> to vector<8x32xbf16>
    %c0_20 = arith.constant 0 : index
    %c0_21 = arith.constant 0 : index
    %52 = vector.load %arg5[%c0_20, %c0_21] : memref<32x256xbf16, #tpu.memory_space<vmem>>, vector<32x256xbf16>
    %cst_22 = arith.constant dense<0.000000e+00> : vector<8x256xf32>
    %53 = tpu.matmul %51, %52, %cst_22 {dimension_numbers = #tpu.dot_dimension_numbers<[1], [0], [0], [1], [0, 0, 1, 1], [], []>} : vector<8x32xbf16>, vector<32x256xbf16>, vector<8x256xf32> -> vector<8x256xf32>
    %c4 = arith.constant 4 : index
    %c0_23 = arith.constant 0 : index
    %54 = vector.load %arg9[%c4, %c0_23] : memref<16x512xf32, #tpu.memory_space<vmem>>, vector<1x256xf32>
    %55 = vector.broadcast %54 : vector<1x256xf32> to vector<8x256xf32>
    %56 = arith.addf %53, %55 : vector<8x256xf32>
    %57 = vector.extract_strided_slice %56 {offsets = [0, 0], sizes = [8, 4], strides = [1, 1]} : vector<8x256xf32> to vector<8x4xf32>
    %58 = vector.extract_strided_slice %56 {offsets = [0, 128], sizes = [8, 4], strides = [1, 1]} : vector<8x256xf32> to vector<8x4xf32>
    %59 = arith.negf %58 : vector<8x4xf32>
    %60 = math.exp %59 : vector<8x4xf32>
    %cst_24 = arith.constant 1.000000e+00 : f32
    %61 = vector.broadcast %cst_24 : f32 to vector<8x4xf32>
    %62 = arith.addf %61, %60 : vector<8x4xf32>
    %63 = arith.divf %61, %62 : vector<8x4xf32>
    %64 = arith.mulf %57, %63 : vector<8x4xf32>
    %65 = arith.addf %14, %64 : vector<8x4xf32>
    %cst_25 = arith.constant dense<0.000000e+00> : vector<8xf32>
    %66 = vector.multi_reduction <add>, %65, %cst_25 [1] : vector<8x4xf32> to vector<8xf32>
    %67 = vector.shape_cast %66 : vector<8xf32> to vector<8x1xf32>
    %cst_26 = arith.constant 4.000000e+00 : f32
    %68 = vector.broadcast %cst_26 : f32 to vector<8x1xf32>
    %69 = arith.divf %67, %68 : vector<8x1xf32>
    %70 = vector.broadcast %69 : vector<8x1xf32> to vector<8x4xf32>
    %71 = arith.subf %65, %70 : vector<8x4xf32>
    %72 = arith.mulf %71, %71 : vector<8x4xf32>
    %cst_27 = arith.constant dense<0.000000e+00> : vector<8xf32>
    %73 = vector.multi_reduction <add>, %72, %cst_27 [1] : vector<8x4xf32> to vector<8xf32>
    %74 = vector.shape_cast %73 : vector<8xf32> to vector<8x1xf32>
    %cst_28 = arith.constant 4.000000e+00 : f32
    %75 = vector.broadcast %cst_28 : f32 to vector<8x1xf32>
    %76 = arith.divf %74, %75 : vector<8x1xf32>
    %cst_29 = arith.constant 9.99999974E-6 : f32
    %77 = vector.broadcast %cst_29 : f32 to vector<8x1xf32>
    %78 = arith.addf %76, %77 : vector<8x1xf32>
    %79 = math.rsqrt %78 : vector<8x1xf32>
    %80 = vector.broadcast %79 : vector<8x1xf32> to vector<8x4xf32>
    %81 = arith.mulf %71, %80 : vector<8x4xf32>
    %c5 = arith.constant 5 : index
    %c0_30 = arith.constant 0 : index
    %82 = vector.load %arg9[%c5, %c0_30] : memref<16x512xf32, #tpu.memory_space<vmem>>, vector<1x4xf32>
    %83 = vector.broadcast %82 : vector<1x4xf32> to vector<8x4xf32>
    %84 = arith.mulf %81, %83 : vector<8x4xf32>
    %c6 = arith.constant 6 : index
    %c0_31 = arith.constant 0 : index
    %85 = vector.load %arg9[%c6, %c0_31] : memref<16x512xf32, #tpu.memory_space<vmem>>, vector<1x4xf32>
    %86 = vector.broadcast %85 : vector<1x4xf32> to vector<8x4xf32>
    %87 = arith.addf %84, %86 : vector<8x4xf32>
    %88 = math.exp %87 : vector<8x4xf32>
    %cst_32 = arith.constant dense<0.000000e+00> : vector<8xf32>
    %89 = vector.multi_reduction <add>, %88, %cst_32 [1] : vector<8x4xf32> to vector<8xf32>
    %90 = vector.shape_cast %89 : vector<8xf32> to vector<8x1xf32>
    %91 = tpu.reciprocal %90 {approx = true} : vector<8x1xf32> -> vector<8x1xf32>
    %92 = vector.broadcast %91 : vector<8x1xf32> to vector<8x4xf32>
    %93 = arith.mulf %88, %92 : vector<8x4xf32>
    %c128 = arith.constant 128 : index
    %c0_33 = arith.constant 0 : index
    %94 = vector.load %arg4[%c128, %c0_33] : memref<132x128xbf16, #tpu.memory_space<vmem>>, vector<4x128xbf16>
    %95 = arith.truncf %93 : vector<8x4xf32> to vector<8x4xbf16>
    %cst_34 = arith.constant dense<0.000000e+00> : vector<8x128xf32>
    %96 = tpu.matmul %95, %94, %cst_34 {dimension_numbers = #tpu.dot_dimension_numbers<[1], [0], [0], [1], [0, 0, 1, 1], [], []>} : vector<8x4xbf16>, vector<4x128xbf16>, vector<8x128xf32> -> vector<8x128xf32>
    %97 = arith.mulf %50, %96 : vector<8x128xf32>
    %98 = arith.truncf %97 : vector<8x128xf32> to vector<8x128xbf16>
    %c0_35 = arith.constant 0 : index
    %c0_36 = arith.constant 0 : index
    %99 = vector.load %arg6[%c0_35, %c0_36] : memref<128x256xbf16, #tpu.memory_space<vmem>>, vector<128x256xbf16>
    %cst_37 = arith.constant dense<0.000000e+00> : vector<8x256xf32>
    %100 = tpu.matmul %98, %99, %cst_37 {dimension_numbers = #tpu.dot_dimension_numbers<[1], [0], [0], [1], [0, 0, 1, 1], [], []>} : vector<8x128xbf16>, vector<128x256xbf16>, vector<8x256xf32> -> vector<8x256xf32>
    %c7 = arith.constant 7 : index
    %c0_38 = arith.constant 0 : index
    %101 = vector.load %arg9[%c7, %c0_38] : memref<16x512xf32, #tpu.memory_space<vmem>>, vector<1x256xf32>
    %102 = vector.broadcast %101 : vector<1x256xf32> to vector<8x256xf32>
    %103 = arith.addf %100, %102 : vector<8x256xf32>
    %104 = vector.extract_strided_slice %103 {offsets = [0, 0], sizes = [8, 32], strides = [1, 1]} : vector<8x256xf32> to vector<8x32xf32>
    %105 = vector.extract_strided_slice %103 {offsets = [0, 128], sizes = [8, 32], strides = [1, 1]} : vector<8x256xf32> to vector<8x32xf32>
    %cst_39 = arith.constant 0.000000e+00 : f32
    %106 = vector.broadcast %cst_39 : f32 to vector<8x32xf32>
    %107 = arith.maximumf %105, %106 : vector<8x32xf32>
    %108 = arith.truncf %107 : vector<8x32xf32> to vector<8x32xbf16>
    %c0_40 = arith.constant 0 : index
    %c0_41 = arith.constant 0 : index
    %109 = vector.load %arg7[%c0_40, %c0_41] : memref<32x256xbf16, #tpu.memory_space<vmem>>, vector<32x256xbf16>
    %cst_42 = arith.constant dense<0.000000e+00> : vector<8x256xf32>
    %110 = tpu.matmul %108, %109, %cst_42 {dimension_numbers = #tpu.dot_dimension_numbers<[1], [0], [0], [1], [0, 0, 1, 1], [], []>} : vector<8x32xbf16>, vector<32x256xbf16>, vector<8x256xf32> -> vector<8x256xf32>
    %c8 = arith.constant 8 : index
    %c0_43 = arith.constant 0 : index
    %111 = vector.load %arg9[%c8, %c0_43] : memref<16x512xf32, #tpu.memory_space<vmem>>, vector<1x256xf32>
    %112 = vector.broadcast %111 : vector<1x256xf32> to vector<8x256xf32>
    %113 = arith.addf %110, %112 : vector<8x256xf32>
    %114 = vector.extract_strided_slice %113 {offsets = [0, 0], sizes = [8, 32], strides = [1, 1]} : vector<8x256xf32> to vector<8x32xf32>
    %115 = vector.extract_strided_slice %113 {offsets = [0, 128], sizes = [8, 32], strides = [1, 1]} : vector<8x256xf32> to vector<8x32xf32>
    %116 = arith.negf %115 : vector<8x32xf32>
    %117 = math.exp %116 : vector<8x32xf32>
    %cst_44 = arith.constant 1.000000e+00 : f32
    %118 = vector.broadcast %cst_44 : f32 to vector<8x32xf32>
    %119 = arith.addf %118, %117 : vector<8x32xf32>
    %120 = arith.divf %118, %119 : vector<8x32xf32>
    %121 = arith.mulf %114, %120 : vector<8x32xf32>
    %122 = arith.addf %104, %121 : vector<8x32xf32>
    %cst_45 = arith.constant dense<0.000000e+00> : vector<8xf32>
    %123 = vector.multi_reduction <add>, %122, %cst_45 [1] : vector<8x32xf32> to vector<8xf32>
    %124 = vector.shape_cast %123 : vector<8xf32> to vector<8x1xf32>
    %cst_46 = arith.constant 3.200000e+01 : f32
    %125 = vector.broadcast %cst_46 : f32 to vector<8x1xf32>
    %126 = arith.divf %124, %125 : vector<8x1xf32>
    %127 = vector.broadcast %126 : vector<8x1xf32> to vector<8x32xf32>
    %128 = arith.subf %122, %127 : vector<8x32xf32>
    %129 = arith.mulf %128, %128 : vector<8x32xf32>
    %cst_47 = arith.constant dense<0.000000e+00> : vector<8xf32>
    %130 = vector.multi_reduction <add>, %129, %cst_47 [1] : vector<8x32xf32> to vector<8xf32>
    %131 = vector.shape_cast %130 : vector<8xf32> to vector<8x1xf32>
    %cst_48 = arith.constant 3.200000e+01 : f32
    %132 = vector.broadcast %cst_48 : f32 to vector<8x1xf32>
    %133 = arith.divf %131, %132 : vector<8x1xf32>
    %cst_49 = arith.constant 9.99999974E-6 : f32
    %134 = vector.broadcast %cst_49 : f32 to vector<8x1xf32>
    %135 = arith.addf %133, %134 : vector<8x1xf32>
    %136 = math.rsqrt %135 : vector<8x1xf32>
    %137 = vector.broadcast %136 : vector<8x1xf32> to vector<8x32xf32>
    %138 = arith.mulf %128, %137 : vector<8x32xf32>
    %139 = arith.truncf %138 : vector<8x32xf32> to vector<8x32xbf16>
    %c0_50 = arith.constant 0 : index
    %c0_51 = arith.constant 0 : index
    %140 = vector.load %arg8[%c0_50, %c0_51] : memref<36x128xbf16, #tpu.memory_space<vmem>>, vector<32x128xbf16>
    %cst_52 = arith.constant dense<0.000000e+00> : vector<8x128xf32>
    %141 = tpu.matmul %139, %140, %cst_52 {dimension_numbers = #tpu.dot_dimension_numbers<[1], [0], [0], [1], [0, 0, 1, 1], [], []>} : vector<8x32xbf16>, vector<32x128xbf16>, vector<8x128xf32> -> vector<8x128xf32>
    %142 = arith.truncf %93 : vector<8x4xf32> to vector<8x4xbf16>
    %c32 = arith.constant 32 : index
    %c0_53 = arith.constant 0 : index
    %143 = vector.load %arg8[%c32, %c0_53] : memref<36x128xbf16, #tpu.memory_space<vmem>>, vector<4x128xbf16>
    %cst_54 = arith.constant dense<0.000000e+00> : vector<8x128xf32>
    %144 = tpu.matmul %142, %143, %cst_54 {dimension_numbers = #tpu.dot_dimension_numbers<[1], [0], [0], [1], [0, 0, 1, 1], [], []>} : vector<8x4xbf16>, vector<4x128xbf16>, vector<8x128xf32> -> vector<8x128xf32>
    %145 = arith.addf %141, %144 : vector<8x128xf32>
    %c9 = arith.constant 9 : index
    %c0_55 = arith.constant 0 : index
    %146 = vector.load %arg9[%c9, %c0_55] : memref<16x512xf32, #tpu.memory_space<vmem>>, vector<1x128xf32>
    %147 = vector.broadcast %146 : vector<1x128xf32> to vector<8x128xf32>
    %148 = arith.addf %145, %147 : vector<8x128xf32>
    %c0_56 = arith.constant 0 : index
    %c0_57 = arith.constant 0 : index
    %149 = vector.load %arg10[%c0_56, %c0_57] : memref<8x128xf32, #tpu.memory_space<vmem>>, vector<8x128xf32>
    tpu.vector_store %arg10[%c0_56, %c0_57], %148 {strides = array<i32>} : memref<8x128xf32, #tpu.memory_space<vmem>>, vector<8x128xf32>,
    return
  }
  func.func @transform_0(%arg0: i32) -> (i32, i32) {
    %c0_i32 = arith.constant 0 : i32
    %c0_i32_0 = arith.constant 0 : i32
    return %arg0, %c0_i32 : i32, i32
  }
  func.func @transform_1(%arg0: i32) -> (i32, i32) {
    %c0_i32 = arith.constant 0 : i32
    %c0_i32_0 = arith.constant 0 : i32
    %c0_i32_1 = arith.constant 0 : i32
    return %c0_i32, %c0_i32_0 : i32, i32
  }
  func.func @transform_2(%arg0: i32) -> (i32, i32) {
    %c0_i32 = arith.constant 0 : i32
    %c0_i32_0 = arith.constant 0 : i32
    %c0_i32_1 = arith.constant 0 : i32
    return %c0_i32, %c0_i32_0 : i32, i32
  }
  func.func @transform_3(%arg0: i32) -> (i32, i32) {
    %c0_i32 = arith.constant 0 : i32
    %c0_i32_0 = arith.constant 0 : i32
    %c0_i32_1 = arith.constant 0 : i32
    return %c0_i32, %c0_i32_0 : i32, i32
  }
  func.func @transform_4(%arg0: i32) -> (i32, i32) {
    %c0_i32 = arith.constant 0 : i32
    %c0_i32_0 = arith.constant 0 : i32
    %c0_i32_1 = arith.constant 0 : i32
    return %c0_i32, %c0_i32_0 : i32, i32
  }
  func.func @transform_5(%arg0: i32) -> (i32, i32) {
    %c0_i32 = arith.constant 0 : i32
    %c0_i32_0 = arith.constant 0 : i32
    %c0_i32_1 = arith.constant 0 : i32
    return %c0_i32, %c0_i32_0 : i32, i32
  }
  func.func @transform_6(%arg0: i32) -> (i32, i32) {
    %c0_i32 = arith.constant 0 : i32
    %c0_i32_0 = arith.constant 0 : i32
    %c0_i32_1 = arith.constant 0 : i32
    return %c0_i32, %c0_i32_0 : i32, i32
  }
  func.func @transform_7(%arg0: i32) -> (i32, i32) {
    %c0_i32 = arith.constant 0 : i32
    %c0_i32_0 = arith.constant 0 : i32
    %c0_i32_1 = arith.constant 0 : i32
    return %c0_i32, %c0_i32_0 : i32, i32
  }
  func.func @transform_8(%arg0: i32) -> (i32, i32) {
    %c0_i32 = arith.constant 0 : i32
    %c0_i32_0 = arith.constant 0 : i32
    %c0_i32_1 = arith.constant 0 : i32
    return %c0_i32, %c0_i32_0 : i32, i32
  }
  func.func @transform_9(%arg0: i32) -> (i32, i32) {
    %c0_i32 = arith.constant 0 : i32
    %c0_i32_0 = arith.constant 0 : i32
    return %arg0, %c0_i32 : i32, i32
  }
}

</mosaic_0001>

<llo_original>
// kernel: tpu_custom_call.1
$region0: #{tpu_custom_call.1}
  #allocation0 [shape = 'u32[]', space=smem, size = 0x4, offset = 0x4, fixed_abs, tag = 'smem constant byte address 0x4 - core index']
  #allocation1 [shape = 'u32[72,128]{1,0:T(1,128)}', space=vmem, size = 0x9000, scoped, tag = 'internal scratch']
  %s0 = inlined_call_operand.hbm [shape: f32[16,32], index: 0, kind: input, shape index: {}]
  %s1 = inlined_call_operand.hbm [shape: bf16[32,512], index: 1, kind: input, shape index: {}]
  %s2 = inlined_call_operand.hbm [shape: bf16[128,256], index: 2, kind: input, shape index: {}]
  %s3 = inlined_call_operand.hbm [shape: bf16[132,128], index: 3, kind: input, shape index: {}]
  %s4 = inlined_call_operand.hbm [shape: bf16[32,256], index: 4, kind: input, shape index: {}]
  %s5 = inlined_call_operand.hbm [shape: bf16[128,256], index: 5, kind: input, shape index: {}]
  %s6 = inlined_call_operand.hbm [shape: bf16[32,256], index: 6, kind: input, shape index: {}]
  %s7 = inlined_call_operand.hbm [shape: bf16[36,128], index: 7, kind: input, shape index: {}]
  %s8 = inlined_call_operand.hbm [shape: f32[16,512], index: 8, kind: input, shape index: {}]
  %s9 = inlined_call_operand.hbm [shape: f32[16,128], index: 9, kind: output, shape index: {}]
  %s10 = sld [smem:[#allocation0]]
  $region105: #{tpu_custom_call.1} parent=0
    _
  %s12 = ssub.s32 1, %s10
  %s13 = scalar_select 0, %s12, %s10
  $region1: #{tpu_custom_call.1} parent=0
    #allocation2 [shape = 'u8[8192]{0}', space=vmem, size = 0x2000, scoped, tag = 'input window, operand 0']
    #allocation3 [shape = 's32[2]{0}', space=sflag, size = 0x8, scoped, tag = 'scoped memory for tpu_custom_call.1']
    #allocation4 [shape = 's32[2]{0}', space=sflag, size = 0x8, scoped, tag = 'scoped memory for tpu_custom_call.1']
    #allocation5 [shape = 'u8[32768]{0}', space=vmem, size = 0x8000, scoped, tag = 'input window, operand 1, single buffered']
    #allocation6 [shape = 's32[1]{0}', space=sflag, size = 0x4, scoped, tag = 'scoped memory for tpu_custom_call.1']
    #allocation7 [shape = 'u8[65536]{0}', space=vmem, size = 0x10000, scoped, tag = 'input window, operand 2, single buffered']
    #allocation8 [shape = 'u8[34816]{0}', space=vmem, size = 0x8800, scoped, tag = 'input window, operand 3, single buffered']
    #allocation9 [shape = 's32[1]{0}', space=sflag, size = 0x4, scoped, tag = 'scoped memory for tpu_custom_call.1']
    #allocation10 [shape = 'u8[16384]{0}', space=vmem, size = 0x4000, scoped, tag = 'input window, operand 4, single buffered']
    #allocation11 [shape = 'u8[65536]{0}', space=vmem, size = 0x10000, scoped, tag = 'input window, operand 5, single buffered']
    #allocation12 [shape = 's32[1]{0}', space=sflag, size = 0x4, scoped, tag = 'scoped memory for tpu_custom_call.1']
    #allocation13 [shape = 'u8[16384]{0}', space=vmem, size = 0x4000, scoped, tag = 'input window, operand 6, single buffered']
    #allocation14 [shape = 'u8[10240]{0}', space=vmem, size = 0x2800, scoped, tag = 'input window, operand 7, single buffered']
    #allocation15 [shape = 's32[1]{0}', space=sflag, size = 0x4, scoped, tag = 'scoped memory for tpu_custom_call.1']
    #allocation16 [shape = 'u8[32768]{0}', space=vmem, size = 0x8000, scoped, tag = 'input window, operand 8, single buffered']
    #allocation17 [shape = 'u8[8192]{0}', space=vmem, size = 0x2000, scoped, tag = 'output window, operand 0']
    %14 = vsyncpa [#allocation3], 0
    %s15 = scalar_lea.sflag [#allocation3], 1
    %16 = vsyncpa %s15, 0
    %17 = vsyncpa [#allocation6], 0
    %18 = vsyncpa [#allocation9], 0
    %19 = vsyncpa [#allocation12], 0
    %20 = vsyncpa [#allocation15], 0
    %21 = vsyncpa [#allocation4], 0
    %s22 = scalar_lea.sflag [#allocation4], 1
    %23 = vsyncpa %s22, 0
    loop: start=0, step=1, limit=4
    $region2: #{tpu_custom_call.1} parent=1 // loop_pre_header
      _
    $region3: #{tpu_custom_call.1} parent=1 // loop_header
      %s25 = sphi 0, %s29
      %p26 = scmp.ge.s32.totalorder %s25, 4
      %s35 = sphi 0, %s37
      %s38 = sphi 0, %s35
      %s39 = sphi 0, %s38
      %s55 = sphi 0, %s39
      %s59 = sphi 0, %s59
      %s61 = sphi 0, %s59
      %s62 = sphi 0, %s61
      %s76 = sphi 0, %s62
      %s80 = sphi 0, %s80
      %s82 = sphi 0, %s80
      %s83 = sphi 0, %s82
      %s97 = sphi 0, %s83
      %s101 = sphi 0, %s101
      %s103 = sphi 0, %s101
      %s104 = sphi 0, %s103
      %s118 = sphi 0, %s104
      %s122 = sphi 0, %s122
      %s124 = sphi 0, %s122
      %s125 = sphi 0, %s124
      %s139 = sphi 0, %s125
      %s143 = sphi 0, %s143
      %s145 = sphi 0, %s143
      %s146 = sphi 0, %s145
      %s160 = sphi 0, %s146
      %s164 = sphi 0, %s164
      %s166 = sphi 0, %s164
      %s167 = sphi 0, %s166
      %s181 = sphi 0, %s167
      %s185 = sphi 0, %s185
      %s187 = sphi 0, %s185
      %s188 = sphi 0, %s187
      %s202 = sphi 0, %s188
      %s206 = sphi 0, %s206
      %s208 = sphi 0, %s206
      %s209 = sphi 0, %s208
      %s223 = sphi 0, %s209
      %s229 = sphi 0, %s231
      %s232 = sphi 0, %s229
      %s233 = sphi 0, %s232
      %s249 = sphi 0, %s233
    $region4: #{tpu_custom_call.1} parent=1 // loop_header_branch
      %28 = sbr.rel (%p26) target = $region8
    $region5: #{tpu_custom_call.1} parent=1 // loop_body
      %s30 = ssub.s32 %s25, 1
      %s31 = ssub.s32 %s25, 2
      %s32 = sadd.s32 %s25, 1
      %s33 = ssub.s32 %s25, %s32
      %p34 = scmp.eq.s32.totalorder %s33, 0
      %s36 = sadd.s32 %s35, 1
      %s37 = scalar_select %p34, %s35, %s36
      %p40 = pneg %p34
      %p41 = scmp.eq.s32.totalorder %s25, 1
      %p42 = por %p40, %p41
      %p43 = scmp.ne.s32.totalorder %s35, %s38
      %p44 = scmp.eq.s32.totalorder %s25, 0
      %p45 = por %p43, %p44
      %p46 = scmp.ne.s32.totalorder %s35, %s38
      %p47 = scmp.eq.s32.totalorder %s30, 1
      %p48 = por %p46, %p47
      %p49 = scmp.ne.s32.totalorder %s38, %s39
      %p50 = scmp.eq.s32.totalorder %s30, 0
      %p51 = por %p49, %p50
      %p52 = scmp.ne.s32.totalorder %s38, %s39
      %p53 = scmp.eq.s32.totalorder %s31, 1
      %p54 = por %p52, %p53
      %p56 = scmp.ne.s32.totalorder %s39, %s55
      %p57 = scmp.eq.s32.totalorder %s31, 0
      %p58 = por %p56, %p57
      %s60 = sadd.s32 %s59, 1
      %p63 = scmp.eq.s32.totalorder %s25, 1
      %p64 = scmp.ne.s32.totalorder %s59, %s61
      %p65 = scmp.eq.s32.totalorder %s25, 0
      %p66 = por %p64, %p65
      %p67 = scmp.ne.s32.totalorder %s59, %s61
      %p68 = scmp.eq.s32.totalorder %s30, 1
      %p69 = por %p67, %p68
      %p70 = scmp.ne.s32.totalorder %s61, %s62
      %p71 = scmp.eq.s32.totalorder %s30, 0
      %p72 = por %p70, %p71
      %p73 = scmp.ne.s32.totalorder %s61, %s62
      %p74 = scmp.eq.s32.totalorder %s31, 1
      %p75 = por %p73, %p74
      %p77 = scmp.ne.s32.totalorder %s62, %s76
      %p78 = scmp.eq.s32.totalorder %s31, 0
      %p79 = por %p77, %p78
      %s81 = sadd.s32 %s80, 1
      %p84 = scmp.eq.s32.totalorder %s25, 1
      %p85 = scmp.ne.s32.totalorder %s80, %s82
      %p86 = scmp.eq.s32.totalorder %s25, 0
      %p87 = por %p85, %p86
      %p88 = scmp.ne.s32.totalorder %s80, %s82
      %p89 = scmp.eq.s32.totalorder %s30, 1
      %p90 = por %p88, %p89
      %p91 = scmp.ne.s32.totalorder %s82, %s83
      %p92 = scmp.eq.s32.totalorder %s30, 0
      %p93 = por %p91, %p92
      %p94 = scmp.ne.s32.totalorder %s82, %s83
      %p95 = scmp.eq.s32.totalorder %s31, 1
      %p96 = por %p94, %p95
      %p98 = scmp.ne.s32.totalorder %s83, %s97
      %p99 = scmp.eq.s32.totalorder %s31, 0
      %p100 = por %p98, %p99
      %s102 = sadd.s32 %s101, 1
      %p105 = scmp.eq.s32.totalorder %s25, 1
      %p106 = scmp.ne.s32.totalorder %s101, %s103
      %p107 = scmp.eq.s32.totalorder %s25, 0
      %p108 = por %p106, %p107
      %p109 = scmp.ne.s32.totalorder %s101, %s103
      %p110 = scmp.eq.s32.totalorder %s30, 1
      %p111 = por %p109, %p110
      %p112 = scmp.ne.s32.totalorder %s103, %s104
      %p113 = scmp.eq.s32.totalorder %s30, 0
      %p114 = por %p112, %p113
      %p115 = scmp.ne.s32.totalorder %s103, %s104
      %p116 = scmp.eq.s32.totalorder %s31, 1
      %p117 = por %p115, %p116
      %p119 = scmp.ne.s32.totalorder %s104, %s118
      %p120 = scmp.eq.s32.totalorder %s31, 0
      %p121 = por %p119, %p120
      %s123 = sadd.s32 %s122, 1
      %p126 = scmp.eq.s32.totalorder %s25, 1
      %p127 = scmp.ne.s32.totalorder %s122, %s124
      %p128 = scmp.eq.s32.totalorder %s25, 0
      %p129 = por %p127, %p128
      %p130 = scmp.ne.s32.totalorder %s122, %s124
      %p131 = scmp.eq.s32.totalorder %s30, 1
      %p132 = por %p130, %p131
      %p133 = scmp.ne.s32.totalorder %s124, %s125
      %p134 = scmp.eq.s32.totalorder %s30, 0
      %p135 = por %p133, %p134
      %p136 = scmp.ne.s32.totalorder %s124, %s125
      %p137 = scmp.eq.s32.totalorder %s31, 1
      %p138 = por %p136, %p137
      %p140 = scmp.ne.s32.totalorder %s125, %s139
      %p141 = scmp.eq.s32.totalorder %s31, 0
      %p142 = por %p140, %p141
      %s144 = sadd.s32 %s143, 1
      %p147 = scmp.eq.s32.totalorder %s25, 1
      %p148 = scmp.ne.s32.totalorder %s143, %s145
      %p149 = scmp.eq.s32.totalorder %s25, 0
      %p150 = por %p148, %p149
      %p151 = scmp.ne.s32.totalorder %s143, %s145
      %p152 = scmp.eq.s32.totalorder %s30, 1
      %p153 = por %p151, %p152
      %p154 = scmp.ne.s32.totalorder %s145, %s146
      %p155 = scmp.eq.s32.totalorder %s30, 0
      %p156 = por %p154, %p155
      %p157 = scmp.ne.s32.totalorder %s145, %s146
      %p158 = scmp.eq.s32.totalorder %s31, 1
      %p159 = por %p157, %p158
      %p161 = scmp.ne.s32.totalorder %s146, %s160
      %p162 = scmp.eq.s32.totalorder %s31, 0
      %p163 = por %p161, %p162
      %s165 = sadd.s32 %s164, 1
      %p168 = scmp.eq.s32.totalorder %s25, 1
      %p169 = scmp.ne.s32.totalorder %s164, %s166
      %p170 = scmp.eq.s32.totalorder %s25, 0
      %p171 = por %p169, %p170
      %p172 = scmp.ne.s32.totalorder %s164, %s166
      %p173 = scmp.eq.s32.totalorder %s30, 1
      %p174 = por %p172, %p173
      %p175 = scmp.ne.s32.totalorder %s166, %s167
      %p176 = scmp.eq.s32.totalorder %s30, 0
      %p177 = por %p175, %p176
      %p178 = scmp.ne.s32.totalorder %s166, %s167
      %p179 = scmp.eq.s32.totalorder %s31, 1
      %p180 = por %p178, %p179
      %p182 = scmp.ne.s32.totalorder %s167, %s181
      %p183 = scmp.eq.s32.totalorder %s31, 0
      %p184 = por %p182, %p183
      %s186 = sadd.s32 %s185, 1
      %p189 = scmp.eq.s32.totalorder %s25, 1
      %p190 = scmp.ne.s32.totalorder %s185, %s187
      %p191 = scmp.eq.s32.totalorder %s25, 0
      %p192 = por %p190, %p191
      %p193 = scmp.ne.s32.totalorder %s185, %s187
      %p194 = scmp.eq.s32.totalorder %s30, 1
      %p195 = por %p193, %p194
      %p196 = scmp.ne.s32.totalorder %s187, %s188
      %p197 = scmp.eq.s32.totalorder %s30, 0
      %p198 = por %p196, %p197
      %p199 = scmp.ne.s32.totalorder %s187, %s188
      %p200 = scmp.eq.s32.totalorder %s31, 1
      %p201 = por %p199, %p200
      %p203 = scmp.ne.s32.totalorder %s188, %s202
      %p204 = scmp.eq.s32.totalorder %s31, 0
      %p205 = por %p203, %p204
      %s207 = sadd.s32 %s206, 1
      %p210 = scmp.eq.s32.totalorder %s25, 1
      %p211 = scmp.ne.s32.totalorder %s206, %s208
      %p212 = scmp.eq.s32.totalorder %s25, 0
      %p213 = por %p211, %p212
      %p214 = scmp.ne.s32.totalorder %s206, %s208
      %p215 = scmp.eq.s32.totalorder %s30, 1
      %p216 = por %p214, %p215
      %p217 = scmp.ne.s32.totalorder %s208, %s209
      %p218 = scmp.eq.s32.totalorder %s30, 0
      %p219 = por %p217, %p218
      %p220 = scmp.ne.s32.totalorder %s208, %s209
      %p221 = scmp.eq.s32.totalorder %s31, 1
      %p222 = por %p220, %p221
      %p224 = scmp.ne.s32.totalorder %s209, %s223
      %p225 = scmp.eq.s32.totalorder %s31, 0
      %p226 = por %p224, %p225
      %s227 = ssub.s32 %s25, %s32
      %p228 = scmp.eq.s32.totalorder %s227, 0
      %s230 = sadd.s32 %s229, 1
      %s231 = scalar_select %p228, %s229, %s230
      %p234 = pneg %p228
      %p235 = scmp.eq.s32.totalorder %s25, 1
      %p236 = por %p234, %p235
      %p237 = scmp.ne.s32.totalorder %s229, %s232
      %p238 = scmp.eq.s32.totalorder %s25, 0
      %p239 = por %p237, %p238
      %p240 = scmp.ne.s32.totalorder %s229, %s232
      %p241 = scmp.eq.s32.totalorder %s30, 1
      %p242 = por %p240, %p241
      %p243 = scmp.ne.s32.totalorder %s232, %s233
      %p244 = scmp.eq.s32.totalorder %s30, 0
      %p245 = por %p243, %p244
      %p246 = scmp.ne.s32.totalorder %s232, %s233
      %p247 = scmp.eq.s32.totalorder %s31, 1
      %p248 = por %p246, %p247
      %p250 = scmp.ne.s32.totalorder %s233, %s249
      %p251 = scmp.eq.s32.totalorder %s31, 0
      %p252 = por %p250, %p251
      %p253 = scmp.le.s32.totalorder 1, %s25
      %p254 = scmp.lt.s32.totalorder %s25, 3
      %p255 = pnand %p253, %p254
      %p256 = pneg %p255
      // Predicated region
      $region9: #{tpu_custom_call.1} parent=5 // pred_check
        _
      $region10: #{tpu_custom_call.1} parent=5 // pred_check_branch
        %258 = sbr.rel (%p255) target = $region12
      $region11: #{tpu_custom_call.1} parent=5 // pred_region
        %s259 = ssub.s32 %s25, 1
        // Predicated region
        $region13: #{tpu_custom_call.1} parent=11 // pred_check
          %p260 = pneg %p72
        $region14: #{tpu_custom_call.1} parent=11 // pred_check_branch
          %262 = sbr.rel (%p260) target = $region16
        $region15: #{tpu_custom_call.1} parent=11 // pred_region
          %264 = vsyncadd [#allocation6], 0
          %s265 = sshll.u32 %s1, 4
          %s266 = int_to_ptr.hbm [resolvable:$true] %s265
          %s267 = sshll.u32 [#allocation5], 4
          %s268 = int_to_ptr.vmem [resolvable:$true] %s267
          %273 = dma.hbm_to_vmem [thread:$0]  %s266, 1024, %s268, [#allocation6], 256, 256, 16
        $region16: #{tpu_custom_call.1} parent=11 // pred_fallthru
          _
        // Predicated region
        $region17: #{tpu_custom_call.1} parent=11 // pred_check
          %p274 = pneg %p93
        $region18: #{tpu_custom_call.1} parent=11 // pred_check_branch
          %276 = sbr.rel (%p274) target = $region20
        $region19: #{tpu_custom_call.1} parent=11 // pred_region
          %278 = vsyncadd [#allocation6], 0
          %s279 = sshll.u32 %s2, 4
          %s280 = int_to_ptr.hbm [resolvable:$true] %s279
          %s281 = sshll.u32 [#allocation7], 4
          %s282 = int_to_ptr.vmem [resolvable:$true] %s281
          %287 = dma.hbm_to_vmem [thread:$0]  %s280, 2048, %s282, [#allocation6], 128, 128, 8
        $region20: #{tpu_custom_call.1} parent=11 // pred_fallthru
          _
        // Predicated region
        $region21: #{tpu_custom_call.1} parent=11 // pred_check
          %p288 = pneg %p114
        $region22: #{tpu_custom_call.1} parent=11 // pred_check_branch
          %290 = sbr.rel (%p288) target = $region24
        $region23: #{tpu_custom_call.1} parent=11 // pred_region
          %292 = vsyncadd [#allocation9], 0
          %s293 = sshll.u32 %s3, 4
          %s294 = int_to_ptr.hbm [resolvable:$true] %s293
          %s295 = sshll.u32 [#allocation8], 4
          %s296 = int_to_ptr.vmem [resolvable:$true] %s295
          %301 = dma.hbm_to_vmem [thread:$0]  %s294, 1088, %s296, [#allocation9], 64, 64, 4
        $region24: #{tpu_custom_call.1} parent=11 // pred_fallthru
          _
        // Predicated region
        $region25: #{tpu_custom_call.1} parent=11 // pred_check
          %p302 = pneg %p135
        $region26: #{tpu_custom_call.1} parent=11 // pred_check_branch
          %304 = sbr.rel (%p302) target = $region28
        $region27: #{tpu_custom_call.1} parent=11 // pred_region
          %306 = vsyncadd [#allocation9], 0
          %s307 = sshll.u32 %s4, 4
          %s308 = int_to_ptr.hbm [resolvable:$true] %s307
          %s309 = sshll.u32 [#allocation10], 4
          %s310 = int_to_ptr.vmem [resolvable:$true] %s309
          %315 = dma.hbm_to_vmem [thread:$0]  %s308, 512, %s310, [#allocation9], 128, 128, 8
        $region28: #{tpu_custom_call.1} parent=11 // pred_fallthru
          _
        // Predicated region
        $region29: #{tpu_custom_call.1} parent=11 // pred_check
          %p316 = pneg %p156
        $region30: #{tpu_custom_call.1} parent=11 // pred_check_branch
          %318 = sbr.rel (%p316) target = $region32
        $region31: #{tpu_custom_call.1} parent=11 // pred_region
          %320 = vsyncadd [#allocation12], 0
          %s321 = sshll.u32 %s5, 4
          %s322 = int_to_ptr.hbm [resolvable:$true] %s321
          %s323 = sshll.u32 [#allocation11], 4
          %s324 = int_to_ptr.vmem [resolvable:$true] %s323
          %329 = dma.hbm_to_vmem [thread:$0]  %s322, 2048, %s324, [#allocation12], 128, 128, 8
        $region32: #{tpu_custom_call.1} parent=11 // pred_fallthru
          _
        // Predicated region
        $region33: #{tpu_custom_call.1} parent=11 // pred_check
          %p330 = pneg %p177
        $region34: #{tpu_custom_call.1} parent=11 // pred_check_branch
          %332 = sbr.rel (%p330) target = $region36
        $region35: #{tpu_custom_call.1} parent=11 // pred_region
          %334 = vsyncadd [#allocation12], 0
          %s335 = sshll.u32 %s6, 4
          %s336 = int_to_ptr.hbm [resolvable:$true] %s335
          %s337 = sshll.u32 [#allocation13], 4
          %s338 = int_to_ptr.vmem [resolvable:$true] %s337
          %343 = dma.hbm_to_vmem [thread:$0]  %s336, 512, %s338, [#allocation12], 128, 128, 8
        $region36: #{tpu_custom_call.1} parent=11 // pred_fallthru
          _
        // Predicated region
        $region37: #{tpu_custom_call.1} parent=11 // pred_check
          %p344 = pneg %p198
        $region38: #{tpu_custom_call.1} parent=11 // pred_check_branch
          %346 = sbr.rel (%p344) target = $region40
        $region39: #{tpu_custom_call.1} parent=11 // pred_region
          %348 = vsyncadd [#allocation15], 0
          %s349 = sshll.u32 %s7, 4
          %s350 = int_to_ptr.hbm [resolvable:$true] %s349
          %s351 = sshll.u32 [#allocation14], 4
          %s352 = int_to_ptr.vmem [resolvable:$true] %s351
          %357 = dma.hbm_to_vmem [thread:$0]  %s350, 320, %s352, [#allocation15], 64, 64, 4
        $region40: #{tpu_custom_call.1} parent=11 // pred_fallthru
          _
        // Predicated region
        $region41: #{tpu_custom_call.1} parent=11 // pred_check
          %p358 = pneg %p219
        $region42: #{tpu_custom_call.1} parent=11 // pred_check_branch
          %360 = sbr.rel (%p358) target = $region44
        $region43: #{tpu_custom_call.1} parent=11 // pred_region
          %362 = vsyncadd [#allocation15], 0
          %s363 = sshll.u32 %s8, 4
          %s364 = int_to_ptr.hbm [resolvable:$true] %s363
          %s365 = sshll.u32 [#allocation16], 4
          %s366 = int_to_ptr.vmem [resolvable:$true] %s365
          %371 = dma.hbm_to_vmem [thread:$0]  %s364, 1024, %s366, [#allocation15], 512, 512, 32
        $region44: #{tpu_custom_call.1} parent=11 // pred_fallthru
          _
      $region12: #{tpu_custom_call.1} parent=5 // pred_fallthru
        _
      %p372 = scmp.lt.s32.totalorder %s25, 2
      // Predicated region
      $region45: #{tpu_custom_call.1} parent=5 // pred_check
        %p373 = pneg %p372
      $region46: #{tpu_custom_call.1} parent=5 // pred_check_branch
        %375 = sbr.rel (%p373) target = $region48
      $region47: #{tpu_custom_call.1} parent=5 // pred_region
        // Predicated region
        $region49: #{tpu_custom_call.1} parent=47 // pred_check
          %p376 = pneg %p45
        $region50: #{tpu_custom_call.1} parent=47 // pred_check_branch
          %378 = sbr.rel (%p376) target = $region52
        $region51: #{tpu_custom_call.1} parent=47 // pred_region
          %s379 = sand.u32 %s35, 1
          %s380 = scalar_lea.sflag [#allocation3], %s379
          %s381 = sand.u32 %s35, 1
          %s382 = smul.addr %s381, 8
          %s383 = scalar_lea.vmem [#allocation2], %s382
          %385 = vsyncadd %s380, 0
          %s386 = smul.addr %s25, 8
          %s387 = scalar_lea.hbm %s0, %s386
          %s389 = sshll.u32 %s387, 4
          %s390 = int_to_ptr.hbm [resolvable:$true] %s389
          %s391 = sshll.u32 %s383, 4
          %s392 = int_to_ptr.vmem [resolvable:$true] %s391
          %394 = dma.hbm_to_vmem [thread:$0]  %s390, 128, %s392, %s380
        $region52: #{tpu_custom_call.1} parent=47 // pred_fallthru
          _
      $region48: #{tpu_custom_call.1} parent=5 // pred_fallthru
        _
      %p395 = scmp.le.s32.totalorder 1, %s25
      %p396 = scmp.lt.s32.totalorder %s25, 3
      %p397 = pnand %p395, %p396
      %p398 = pneg %p397
      // Predicated region
      $region53: #{tpu_custom_call.1} parent=5 // pred_check
        _
      $region54: #{tpu_custom_call.1} parent=5 // pred_check_branch
        %400 = sbr.rel (%p397) target = $region56
      $region55: #{tpu_custom_call.1} parent=5 // pred_region
        %s401 = ssub.s32 %s25, 1
        %s402 = sand.u32 %s38, 1
        %s403 = scalar_lea.sflag [#allocation3], %s402
        %s404 = sand.u32 %s38, 1
        %s405 = smul.addr %s404, 8
        %s406 = scalar_lea.vmem [#allocation2], %s405
        // Predicated region
        $region57: #{tpu_custom_call.1} parent=55 // pred_check
          %p407 = pneg %p51
        $region58: #{tpu_custom_call.1} parent=55 // pred_check_branch
          %409 = sbr.rel (%p407) target = $region60
        $region59: #{tpu_custom_call.1} parent=55 // pred_region
          %411 = dma.done %s403, 128
        $region60: #{tpu_custom_call.1} parent=55 // pred_fallthru
          _
        // Predicated region
        $region61: #{tpu_custom_call.1} parent=55 // pred_check
          %p412 = pneg %p72
        $region62: #{tpu_custom_call.1} parent=55 // pred_check_branch
          %414 = sbr.rel (%p412) target = $region64
        $region63: #{tpu_custom_call.1} parent=55 // pred_region
          %416 = dma.done [#allocation6], 1024
        $region64: #{tpu_custom_call.1} parent=55 // pred_fallthru
          _
        // Predicated region
        $region65: #{tpu_custom_call.1} parent=55 // pred_check
          %p417 = pneg %p93
        $region66: #{tpu_custom_call.1} parent=55 // pred_check_branch
          %419 = sbr.rel (%p417) target = $region68
        $region67: #{tpu_custom_call.1} parent=55 // pred_region
          %421 = dma.done [#allocation6], 2048
        $region68: #{tpu_custom_call.1} parent=55 // pred_fallthru
          _
        // Predicated region
        $region69: #{tpu_custom_call.1} parent=55 // pred_check
          %p422 = pneg %p114
        $region70: #{tpu_custom_call.1} parent=55 // pred_check_branch
          %424 = sbr.rel (%p422) target = $region72
        $region71: #{tpu_custom_call.1} parent=55 // pred_region
          %426 = dma.done [#allocation9], 1088
        $region72: #{tpu_custom_call.1} parent=55 // pred_fallthru
          _
        // Predicated region
        $region73: #{tpu_custom_call.1} parent=55 // pred_check
          %p427 = pneg %p135
        $region74: #{tpu_custom_call.1} parent=55 // pred_check_branch
          %429 = sbr.rel (%p427) target = $region76
        $region75: #{tpu_custom_call.1} parent=55 // pred_region
          %431 = dma.done [#allocation9], 512
        $region76: #{tpu_custom_call.1} parent=55 // pred_fallthru
          _
        // Predicated region
        $region77: #{tpu_custom_call.1} parent=55 // pred_check
          %p432 = pneg %p156
        $region78: #{tpu_custom_call.1} parent=55 // pred_check_branch
          %434 = sbr.rel (%p432) target = $region80
        $region79: #{tpu_custom_call.1} parent=55 // pred_region
          %436 = dma.done [#allocation12], 2048
        $region80: #{tpu_custom_call.1} parent=55 // pred_fallthru
          _
        // Predicated region
        $region81: #{tpu_custom_call.1} parent=55 // pred_check
          %p437 = pneg %p177
        $region82: #{tpu_custom_call.1} parent=55 // pred_check_branch
          %439 = sbr.rel (%p437) target = $region84
        $region83: #{tpu_custom_call.1} parent=55 // pred_region
          %441 = dma.done [#allocation12], 512
        $region84: #{tpu_custom_call.1} parent=55 // pred_fallthru
          _
        // Predicated region
        $region85: #{tpu_custom_call.1} parent=55 // pred_check
          %p442 = pneg %p198
        $region86: #{tpu_custom_call.1} parent=55 // pred_check_branch
          %444 = sbr.rel (%p442) target = $region88
        $region87: #{tpu_custom_call.1} parent=55 // pred_region
          %446 = dma.done [#allocation15], 320
        $region88: #{tpu_custom_call.1} parent=55 // pred_fallthru
          _
        // Predicated region
        $region89: #{tpu_custom_call.1} parent=55 // pred_check
          %p447 = pneg %p219
        $region90: #{tpu_custom_call.1} parent=55 // pred_check_branch
          %449 = sbr.rel (%p447) target = $region92
        $region91: #{tpu_custom_call.1} parent=55 // pred_region
          %451 = dma.done [#allocation15], 1024
        $region92: #{tpu_custom_call.1} parent=55 // pred_fallthru
          _
        %s452 = sand.u32 %s38, 1
        %s453 = scalar_lea.sflag [#allocation3], %s452
        %s454 = sand.u32 %s38, 1
        %s455 = smul.addr %s454, 8
        %s456 = scalar_lea.vmem [#allocation2], %s455
        %p457 = pneg %p51
        %p458 = pneg %p48
        %p459 = pneg %p72
        %p460 = pneg %p69
        %p461 = pneg %p93
        %p462 = pneg %p90
        %p463 = pneg %p114
        %p464 = pneg %p111
        %p465 = pneg %p135
        %p466 = pneg %p132
        %p467 = pneg %p156
        %p468 = pneg %p153
        %p469 = pneg %p177
        %p470 = pneg %p174
        %p471 = pneg %p198
        %p472 = pneg %p195
        %p473 = pneg %p219
        %p474 = pneg %p216
        %p475 = pneg %p245
        %p476 = pneg %p242
        %s477 = sand.u32 %s232, 1
        %s478 = scalar_lea.sflag [#allocation4], %s477
        %s479 = sand.u32 %s232, 1
        %s480 = smul.addr %s479, 8
        %s481 = scalar_lea.vmem [#allocation17], %s480
        %v483 = vld [vmem:[%s406] sm:$0xff]
        %v484 = vpack.c.bf16 %v483, %v483
        %v485 = vld [vmem:[#allocation5] sm:$0xff]
        %v486 = vld [vmem:[#allocation5 + $0x8] sm:$0xff]
        %v487 = vld [vmem:[#allocation5 + $0x10] sm:$0xff]
        %v488 = vld [vmem:[#allocation5 + $0x18] sm:$0xff]
        %v489 = vld [vmem:[#allocation5 + $0x20] sm:$0xff]
        %v490 = vld [vmem:[#allocation5 + $0x28] sm:$0xff]
        %v491 = vld [vmem:[#allocation5 + $0x30] sm:$0xff]
        %v492 = vld [vmem:[#allocation5 + $0x38] sm:$0xff]
        %v493 = vld [vmem:[#allocation16] ss:$8 sm:$0xf]
        %v495 = vperm.slane %v493, 0
        %v496 = vperm.slane %v493, 1
        %v497 = vperm.slane %v493, 2
        %v498 = vperm.slane %v493, 3
        %v511 = vunpack.c.l.b16 %v485
        %v512 = vunpack.c.h.b16 %v485
        %v513 = vunpack.c.l.b16 %v486
        %v514 = vunpack.c.h.b16 %v486
        %v515 = vunpack.c.l.b16 %v487
        %v516 = vunpack.c.h.b16 %v487
        %v517 = vunpack.c.l.b16 %v488
        %v518 = vunpack.c.h.b16 %v488
        %v519 = vunpack.c.l.b16 %v489
        %v520 = vunpack.c.h.b16 %v489
        %v521 = vunpack.c.l.b16 %v490
        %v522 = vunpack.c.h.b16 %v490
        %v523 = vunpack.c.l.b16 %v491
        %v524 = vunpack.c.h.b16 %v491
        %v525 = vunpack.c.l.b16 %v492
        %v526 = vunpack.c.h.b16 %v492
        %v527 = vpack.c.b16 %v515, %v511
        %v528 = vpack.c.b16 %v516, %v512
        %v529 = vpack.c.b16 %v517, %v513
        %v530 = vpack.c.b16 %v518, %v514
        %v531 = vpack.c.b16 %v523, %v519
        %v532 = vpack.c.b16 %v524, %v520
        %v533 = vpack.c.b16 %v525, %v521
        %v534 = vpack.c.b16 %v526, %v522
        %vm543 = vcmask 261120
        %v545 = vsel %vm543, %v484, 0
        %547 = vmatpush.bf16.msra.mxu0 0
        %548 = vmatpush.bf16.msra.mxu0 0
        %549 = vmatpush.bf16.msra.mxu0 0
        %550 = vmatpush.bf16.msra.mxu0 0
        %551 = vmatpush.bf16.msra.mxu0 0
        %552 = vmatpush.bf16.msra.mxu0 0
        %553 = vmatpush.bf16.msra.mxu0 %v531
        %554 = vmatpush.bf16.msra.mxu0 %v527
        %555 = vmatmul.bf16.gmra.mxu0 %v545
        %v556 = vpop.f32.mrf.mxu0
        %v557 = vadd.f32 %v495, %v556
        %v558 = vpop.f32.mrf.mxu0
        %559 = vdwg.mxu0
        %560 = vmatpush.bf16.msra.mxu0 0
        %561 = vmatpush.bf16.msra.mxu0 0
        %562 = vmatpush.bf16.msra.mxu0 0
        %563 = vmatpush.bf16.msra.mxu0 0
        %564 = vmatpush.bf16.msra.mxu0 0
        %565 = vmatpush.bf16.msra.mxu0 0
        %566 = vmatpush.bf16.msra.mxu0 %v532
        %567 = vmatpush.bf16.msra.mxu0 %v528
        %568 = vmatmul.bf16.gmra.mxu0 %v545
        %v569 = vpop.f32.mrf.mxu0
        %v570 = vadd.f32 %v496, %v569
        %v571 = vpop.f32.mrf.mxu0
        %572 = vdwg.mxu0
        %573 = vmatpush.bf16.msra.mxu0 0
        %574 = vmatpush.bf16.msra.mxu0 0
        %575 = vmatpush.bf16.msra.mxu0 0
        %576 = vmatpush.bf16.msra.mxu0 0
        %577 = vmatpush.bf16.msra.mxu0 0
        %578 = vmatpush.bf16.msra.mxu0 0
        %579 = vmatpush.bf16.msra.mxu0 %v533
        %580 = vmatpush.bf16.msra.mxu0 %v529
        %581 = vmatmul.bf16.gmra.mxu0 %v545
        %v582 = vpop.f32.mrf.mxu0
        %v583 = vadd.f32 %v497, %v582
        %v584 = vpop.f32.mrf.mxu0
        %585 = vdwg.mxu0
        %586 = vmatpush.bf16.msra.mxu0 0
        %587 = vmatpush.bf16.msra.mxu0 0
        %588 = vmatpush.bf16.msra.mxu0 0
        %589 = vmatpush.bf16.msra.mxu0 0
        %590 = vmatpush.bf16.msra.mxu0 0
        %591 = vmatpush.bf16.msra.mxu0 0
        %592 = vmatpush.bf16.msra.mxu0 %v534
        %593 = vmatpush.bf16.msra.mxu0 %v530
        %594 = vmatmul.bf16.gmra.mxu0 %v545
        %v595 = vpop.f32.mrf.mxu0
        %v596 = vadd.f32 %v498, %v595
        %v597 = vpop.f32.mrf.mxu0
        %598 = vdwg.mxu0
        %v599 = vmax.f32 %v557, 0.0
        %v600 = vmax.f32 %v583, 0.0
        %v601 = vpack.c.bf16 %v599, %v599
        %v602 = vld [vmem:[#allocation7] sm:$0xff]
        %v603 = vld [vmem:[#allocation7 + $0x8] sm:$0xff]
        %v604 = vld [vmem:[#allocation7 + $0x10] sm:$0xff]
        %v605 = vld [vmem:[#allocation7 + $0x18] sm:$0xff]
        %v606 = vld [vmem:[#allocation7 + $0x20] sm:$0xff]
        %v607 = vld [vmem:[#allocation7 + $0x28] sm:$0xff]
        %v608 = vld [vmem:[#allocation7 + $0x30] sm:$0xff]
        %v609 = vld [vmem:[#allocation7 + $0x38] sm:$0xff]
        %v610 = vld [vmem:[#allocation7 + $0x40] sm:$0xff]
        %v611 = vld [vmem:[#allocation7 + $0x48] sm:$0xff]
        %v612 = vld [vmem:[#allocation7 + $0x50] sm:$0xff]
        %v613 = vld [vmem:[#allocation7 + $0x58] sm:$0xff]
        %v614 = vld [vmem:[#allocation7 + $0x60] sm:$0xff]
        %v615 = vld [vmem:[#allocation7 + $0x68] sm:$0xff]
        %v616 = vld [vmem:[#allocation7 + $0x70] sm:$0xff]
        %v617 = vld [vmem:[#allocation7 + $0x78] sm:$0xff]
        %s618 = scalar_lea.vmem [#allocation16], 3
        %v619 = vld [vmem:[%s618] ss:$8 sm:$0x3]
        %v621 = vperm.slane %v619, 0
        %v622 = vperm.slane %v619, 1
        %v641 = vunpack.c.l.b16 %v602
        %v642 = vunpack.c.h.b16 %v602
        %v643 = vunpack.c.l.b16 %v603
        %v644 = vunpack.c.h.b16 %v603
        %v645 = vunpack.c.l.b16 %v604
        %v646 = vunpack.c.h.b16 %v604
        %v647 = vunpack.c.l.b16 %v605
        %v648 = vunpack.c.h.b16 %v605
        %v649 = vunpack.c.l.b16 %v606
        %v650 = vunpack.c.h.b16 %v606
        %v651 = vunpack.c.l.b16 %v607
        %v652 = vunpack.c.h.b16 %v607
        %v653 = vunpack.c.l.b16 %v608
        %v654 = vunpack.c.h.b16 %v608
        %v655 = vunpack.c.l.b16 %v609
        %v656 = vunpack.c.h.b16 %v609
        %v657 = vunpack.c.l.b16 %v610
        %v658 = vunpack.c.h.b16 %v610
        %v659 = vunpack.c.l.b16 %v611
        %v660 = vunpack.c.h.b16 %v611
        %v661 = vunpack.c.l.b16 %v612
        %v662 = vunpack.c.h.b16 %v612
        %v663 = vunpack.c.l.b16 %v613
        %v664 = vunpack.c.h.b16 %v613
        %v665 = vunpack.c.l.b16 %v614
        %v666 = vunpack.c.h.b16 %v614
        %v667 = vunpack.c.l.b16 %v615
        %v668 = vunpack.c.h.b16 %v615
        %v669 = vunpack.c.l.b16 %v616
        %v670 = vunpack.c.h.b16 %v616
        %v671 = vunpack.c.l.b16 %v617
        %v672 = vunpack.c.h.b16 %v617
        %v673 = vpack.c.b16 %v643, %v641
        %v674 = vpack.c.b16 %v644, %v642
        %v675 = vpack.c.b16 %v647, %v645
        %v676 = vpack.c.b16 %v648, %v646
        %v677 = vpack.c.b16 %v651, %v649
        %v678 = vpack.c.b16 %v652, %v650
        %v679 = vpack.c.b16 %v655, %v653
        %v680 = vpack.c.b16 %v656, %v654
        %v681 = vpack.c.b16 %v659, %v657
        %v682 = vpack.c.b16 %v660, %v658
        %v683 = vpack.c.b16 %v663, %v661
        %v684 = vpack.c.b16 %v664, %v662
        %v685 = vpack.c.b16 %v667, %v665
        %v686 = vpack.c.b16 %v668, %v666
        %v687 = vpack.c.b16 %v671, %v669
        %v688 = vpack.c.b16 %v672, %v670
        %705 = vmatpush.bf16.msra.mxu0 %v687
        %706 = vmatpush.bf16.msra.mxu0 %v685
        %707 = vmatpush.bf16.msra.mxu0 %v683
        %708 = vmatpush.bf16.msra.mxu0 %v681
        %709 = vmatpush.bf16.msra.mxu0 %v679
        %710 = vmatpush.bf16.msra.mxu0 %v677
        %711 = vmatpush.bf16.msra.mxu0 %v675
        %712 = vmatpush.bf16.msra.mxu0 %v673
        %713 = vmatmul.bf16.gmra.mxu0 %v601
        %v714 = vpop.f32.mrf.mxu0
        %v715 = vadd.f32 %v621, %v714
        %v716 = vpop.f32.mrf.mxu0
        %717 = vdwg.mxu0
        %718 = vmatpush.bf16.msra.mxu0 %v688
        %719 = vmatpush.bf16.msra.mxu0 %v686
        %720 = vmatpush.bf16.msra.mxu0 %v684
        %721 = vmatpush.bf16.msra.mxu0 %v682
        %722 = vmatpush.bf16.msra.mxu0 %v680
        %723 = vmatpush.bf16.msra.mxu0 %v678
        %724 = vmatpush.bf16.msra.mxu0 %v676
        %725 = vmatpush.bf16.msra.mxu0 %v674
        %726 = vmatmul.bf16.gmra.mxu0 %v601
        %v727 = vpop.f32.mrf.mxu0
        %v728 = vadd.f32 %v622, %v727
        %v729 = vpop.f32.mrf.mxu0
        %730 = vdwg.mxu0
        %v731 = vxor.u32 %v728, 2147483648
        %v732 = vmul.f32 %v731, 1.442695
        %v733 = vpow.pop %v732
        %v734 = vadd.f32 %v733, 1.0
        %v735 = vrcp.pop %v734
        %v736 = vmul.f32 %v734, %v735
        %v737 = vsub.f32 1.0, %v736
        %v738 = vmul.f32 %v735, %v737
        %v739 = vadd.f32 %v735, %v738
        %vm740 = vweird.f32 %v734
        %vm741 = vweird.f32 %v735
        %vm742 = vmor %vm740, %vm741
        %v743 = vsel %vm742, %v735, %v739
        %v744 = vand.u32 2147483647, %v734
        %vm745 = vcmp.eq.f32.partialorder %v744, 8.507059e+37
        %v746 = vand.u32 %v734, 2147483648
        %v747 = vor.u32 1.1754944e-38, %v746
        %v748 = vsel %vm745, %v747, %v743
        %v749 = vmul.f32 1.0, %v748
        %v750 = vmul.f32 %v715, %v749
        %v751 = vadd.f32 %v570, %v750
        %v752 = vld [vmem:[#allocation8] sm:$0xf]
        %v753 = vld [vmem:[#allocation8 + $0x4] sm:$0xf]
        %v754 = vld [vmem:[#allocation8 + $0x8] sm:$0xf]
        %v755 = vld [vmem:[#allocation8 + $0xc] sm:$0xf]
        %v756 = vld [vmem:[#allocation8 + $0x10] sm:$0xf]
        %v757 = vld [vmem:[#allocation8 + $0x14] sm:$0xf]
        %v758 = vld [vmem:[#allocation8 + $0x18] sm:$0xf]
        %v759 = vld [vmem:[#allocation8 + $0x1c] sm:$0xf]
        %v760 = vld [vmem:[#allocation8 + $0x20] sm:$0xf]
        %v761 = vld [vmem:[#allocation8 + $0x24] sm:$0xf]
        %v762 = vld [vmem:[#allocation8 + $0x28] sm:$0xf]
        %v763 = vld [vmem:[#allocation8 + $0x2c] sm:$0xf]
        %v764 = vld [vmem:[#allocation8 + $0x30] sm:$0xf]
        %v765 = vld [vmem:[#allocation8 + $0x34] sm:$0xf]
        %v766 = vld [vmem:[#allocation8 + $0x38] sm:$0xf]
        %v767 = vld [vmem:[#allocation8 + $0x3c] sm:$0xf]
        %v768 = vpack.c.bf16 %v751, %v751
        %v785 = vunpack.c.l.b16 %v752
        %v786 = vunpack.c.l.b16 %v753
        %v787 = vunpack.c.l.b16 %v754
        %v788 = vunpack.c.l.b16 %v755
        %v789 = vunpack.c.l.b16 %v756
        %v790 = vunpack.c.l.b16 %v757
        %v791 = vunpack.c.l.b16 %v758
        %v792 = vunpack.c.l.b16 %v759
        %v793 = vunpack.c.l.b16 %v760
        %v794 = vunpack.c.l.b16 %v761
        %v795 = vunpack.c.l.b16 %v762
        %v796 = vunpack.c.l.b16 %v763
        %v797 = vunpack.c.l.b16 %v764
        %v798 = vunpack.c.l.b16 %v765
        %v799 = vunpack.c.l.b16 %v766
        %v800 = vunpack.c.l.b16 %v767
        %v801 = vpack.c.b16 %v786, %v785
        %v802 = vpack.c.b16 %v788, %v787
        %v803 = vpack.c.b16 %v790, %v789
        %v804 = vpack.c.b16 %v792, %v791
        %v805 = vpack.c.b16 %v794, %v793
        %v806 = vpack.c.b16 %v796, %v795
        %v807 = vpack.c.b16 %v798, %v797
        %v808 = vpack.c.b16 %v800, %v799
        %817 = vmatpush.bf16.msra.mxu0 %v808
        %818 = vmatpush.bf16.msra.mxu0 %v807
        %819 = vmatpush.bf16.msra.mxu0 %v806
        %820 = vmatpush.bf16.msra.mxu0 %v805
        %821 = vmatpush.bf16.msra.mxu0 %v804
        %822 = vmatpush.bf16.msra.mxu0 %v803
        %823 = vmatpush.bf16.msra.mxu0 %v802
        %824 = vmatpush.bf16.msra.mxu0 %v801
        %825 = vmatmul.bf16.gmra.mxu0 %v768
        %v826 = vpop.f32.mrf.mxu0
        %v827 = vadd.f32 0.0, %v826
        %v828 = vpop.f32.mrf.mxu0
        %829 = vdwg.mxu0
        %v830 = vmul.f32 %v751, %v751
        %v831 = vpack.c.bf16 %v830, %v830
        %832 = vmatpush.bf16.msra.mxu0 %v808
        %833 = vmatpush.bf16.msra.mxu0 %v807
        %834 = vmatpush.bf16.msra.mxu0 %v806
        %835 = vmatpush.bf16.msra.mxu0 %v805
        %836 = vmatpush.bf16.msra.mxu0 %v804
        %837 = vmatpush.bf16.msra.mxu0 %v803
        %838 = vmatpush.bf16.msra.mxu0 %v802
        %839 = vmatpush.bf16.msra.mxu0 %v801
        %840 = vmatmul.bf16.gmra.mxu0 %v831
        %v841 = vpop.f32.mrf.mxu0
        %v842 = vadd.f32 0.0, %v841
        %v843 = vpop.f32.mrf.mxu0
        %844 = vdwg.mxu0
        %v845 = vmul.f32 %v827, %v827
        %v846 = vsub.f32 %v842, %v845
        %v847 = vmax.f32 %v846, 0.0
        %v848 = vsub.f32 %v751, %v827
        %v849 = vadd.f32 %v847, 1e-05
        %v850 = vrsqrt.pop %v849
        %v851 = vmul.f32 %v850, %v849
        %v852 = vmul.f32 %v851, %v850
        %v853 = vmul.f32 0.5, %v852
        %v854 = vsub.f32 1.5, %v853
        %v855 = vmul.f32 %v850, %v854
        %vm856 = vweird.f32 %v849
        %vm857 = vweird.f32 %v850
        %vm858 = vmor %vm856, %vm857
        %v859 = vsel %vm858, %v850, %v855
        %v860 = vmul.f32 %v848, %v859
        %v861 = vld [vmem:[#allocation16 + $0x1] ss:$0 sm:$0xff]
        %v862 = vmul.f32 %v860, %v861
        %v863 = vld [vmem:[#allocation16 + $0x2] ss:$0 sm:$0xff]
        %v864 = vadd.f32 %v862, %v863
        %v865 = vpack.c.bf16 %v600, %v600
        %v866 = vld [vmem:[#allocation10] sm:$0xff]
        %v867 = vld [vmem:[#allocation10 + $0x8] sm:$0xff]
        %v868 = vld [vmem:[#allocation10 + $0x10] sm:$0xff]
        %v869 = vld [vmem:[#allocation10 + $0x18] sm:$0xff]
        %s870 = scalar_lea.vmem [#allocation16], 4
        %v871 = vld [vmem:[%s870] ss:$8 sm:$0x3]
        %v873 = vperm.slane %v871, 0
        %v874 = vperm.slane %v871, 1
        %v881 = vunpack.c.l.b16 %v866
        %v882 = vunpack.c.h.b16 %v866
        %v883 = vunpack.c.l.b16 %v867
        %v884 = vunpack.c.h.b16 %v867
        %v885 = vunpack.c.l.b16 %v868
        %v886 = vunpack.c.h.b16 %v868
        %v887 = vunpack.c.l.b16 %v869
        %v888 = vunpack.c.h.b16 %v869
        %v889 = vpack.c.b16 %v883, %v881
        %v890 = vpack.c.b16 %v884, %v882
        %v891 = vpack.c.b16 %v887, %v885
        %v892 = vpack.c.b16 %v888, %v886
        %v898 = vsel %vm543, %v865, 0
        %900 = vmatpush.bf16.msra.mxu0 0
        %901 = vmatpush.bf16.msra.mxu0 0
        %902 = vmatpush.bf16.msra.mxu0 0
        %903 = vmatpush.bf16.msra.mxu0 0
        %904 = vmatpush.bf16.msra.mxu0 0
        %905 = vmatpush.bf16.msra.mxu0 0
        %906 = vmatpush.bf16.msra.mxu0 %v891
        %907 = vmatpush.bf16.msra.mxu0 %v889
        %908 = vmatmul.bf16.gmra.mxu0 %v898
        %v909 = vpop.f32.mrf.mxu0
        %v910 = vadd.f32 %v873, %v909
        %v911 = vpop.f32.mrf.mxu0
        %912 = vdwg.mxu0
        %913 = vmatpush.bf16.msra.mxu0 0
        %914 = vmatpush.bf16.msra.mxu0 0
        %915 = vmatpush.bf16.msra.mxu0 0
        %916 = vmatpush.bf16.msra.mxu0 0
        %917 = vmatpush.bf16.msra.mxu0 0
        %918 = vmatpush.bf16.msra.mxu0 0
        %919 = vmatpush.bf16.msra.mxu0 %v892
        %920 = vmatpush.bf16.msra.mxu0 %v890
        %921 = vmatmul.bf16.gmra.mxu0 %v898
        %v922 = vpop.f32.mrf.mxu0
        %v923 = vadd.f32 %v874, %v922
        %v924 = vpop.f32.mrf.mxu0
        %925 = vdwg.mxu0
        %v926 = vxor.u32 %v923, 2147483648
        %v927 = vmul.f32 %v926, 1.442695
        %v928 = vpow.pop %v927
        %v929 = vadd.f32 %v928, 1.0
        %v930 = vrcp.pop %v929
        %v931 = vmul.f32 %v929, %v930
        %v932 = vsub.f32 1.0, %v931
        %v933 = vmul.f32 %v930, %v932
        %v934 = vadd.f32 %v930, %v933
        %vm935 = vweird.f32 %v929
        %vm936 = vweird.f32 %v930
        %vm937 = vmor %vm935, %vm936
        %v938 = vsel %vm937, %v930, %v934
        %v939 = vand.u32 2147483647, %v929
        %vm940 = vcmp.eq.f32.partialorder %v939, 8.507059e+37
        %v941 = vand.u32 %v929, 2147483648
        %v942 = vor.u32 1.1754944e-38, %v941
        %v943 = vsel %vm940, %v942, %v938
        %v944 = vmul.f32 1.0, %v943
        %v945 = vmul.f32 %v910, %v944
        %v946 = vadd.f32 %v596, %v945
        %vm947 = vcmask 31744
        %v948 = vsel %vm947, %v946, 0.0
        %949 = vadd.xlane.f32.xlu0 %v948
        %v950 = vpop.xlane.xlu0 %949
        %v951 = vrcp.pop 4.0
        %v952 = vmul.f32 4.0, %v951
        %v953 = vsub.f32 1.0, %v952
        %v954 = vmul.f32 %v951, %v953
        %v955 = vadd.f32 %v951, %v954
        %vm956 = vweird.f32 %v951
        %v957 = vsel %vm956, %v951, %v955
        %v958 = vmul.f32 %v950, %v957
        %v959 = vsub.f32 %v946, %v958
        %v960 = vmul.f32 %v959, %v959
        %v961 = vsel %vm947, %v960, 0.0
        %962 = vadd.xlane.f32.xlu0 %v961
        %v963 = vpop.xlane.xlu0 %962
        %v964 = vmul.f32 %v963, %v957
        %v965 = vadd.f32 %v964, 1e-05
        %v966 = vrsqrt.pop %v965
        %v967 = vmul.f32 %v966, %v965
        %v968 = vmul.f32 %v967, %v966
        %v969 = vmul.f32 0.5, %v968
        %v970 = vsub.f32 1.5, %v969
        %v971 = vmul.f32 %v966, %v970
        %vm972 = vweird.f32 %v965
        %vm973 = vweird.f32 %v966
        %vm974 = vmor %vm972, %vm973
        %v975 = vsel %vm974, %v966, %v971
        %v976 = vmul.f32 %v959, %v975
        %v977 = vld [vmem:[#allocation16 + $0x5] ss:$0 sm:$0xff]
        %v978 = vmul.f32 %v976, %v977
        %v979 = vld [vmem:[#allocation16 + $0x6] ss:$0 sm:$0xff]
        %v980 = vadd.f32 %v978, %v979
        %v981 = vmul.f32 %v980, 1.442695
        %v982 = vpow.pop %v981
        %v983 = vsel %vm947, %v982, 0.0
        %984 = vadd.xlane.f32.xlu0 %v983
        %v985 = vpop.xlane.xlu0 %984
        %v986 = vrcp.pop %v985
        %v987 = vmul.f32 %v982, %v986
        %v988 = vld [vmem:[#allocation8 + $0x40] sm:$0x3]
        %v989 = vpack.c.bf16 %v987, %v987
        %v991 = vsel %vm947, %v989, 0
        %vm993 = vcmask 1041408
        %v995 = vsel %vm993, %v988, 0
        %997 = vmatpush.bf16.msra.mxu0 0
        %998 = vmatpush.bf16.msra.mxu0 0
        %999 = vmatpush.bf16.msra.mxu0 0
        %1000 = vmatpush.bf16.msra.mxu0 0
        %1001 = vmatpush.bf16.msra.mxu0 0
        %1002 = vmatpush.bf16.msra.mxu0 0
        %1003 = vmatpush.bf16.msra.mxu0 0
        %1004 = vmatpush.bf16.msra.mxu0 %v995
        %1005 = vmatmul.bf16.gmra.mxu0 %v991
        %v1006 = vpop.f32.mrf.mxu0
        %v1007 = vadd.f32 0.0, %v1006
        %v1008 = vpop.f32.mrf.mxu0
        %1009 = vdwg.mxu0
        %v1010 = vmul.f32 %v864, %v1007
        %v1011 = vpack.c.bf16 %v1010, %v1010
        %v1012 = vld [vmem:[#allocation11] sm:$0xff]
        %v1013 = vld [vmem:[#allocation11 + $0x8] sm:$0xff]
        %v1014 = vld [vmem:[#allocation11 + $0x10] sm:$0xff]
        %v1015 = vld [vmem:[#allocation11 + $0x18] sm:$0xff]
        %v1016 = vld [vmem:[#allocation11 + $0x20] sm:$0xff]
        %v1017 = vld [vmem:[#allocation11 + $0x28] sm:$0xff]
        %v1018 = vld [vmem:[#allocation11 + $0x30] sm:$0xff]
        %v1019 = vld [vmem:[#allocation11 + $0x38] sm:$0xff]
        %v1020 = vld [vmem:[#allocation11 + $0x40] sm:$0xff]
        %v1021 = vld [vmem:[#allocation11 + $0x48] sm:$0xff]
        %v1022 = vld [vmem:[#allocation11 + $0x50] sm:$0xff]
        %v1023 = vld [vmem:[#allocation11 + $0x58] sm:$0xff]
        %v1024 = vld [vmem:[#allocation11 + $0x60] sm:$0xff]
        %v1025 = vld [vmem:[#allocation11 + $0x68] sm:$0xff]
        %v1026 = vld [vmem:[#allocation11 + $0x70] sm:$0xff]
        %v1027 = vld [vmem:[#allocation11 + $0x78] sm:$0xff]
        %s1028 = scalar_lea.vmem [#allocation16], 7
        %v1029 = vld [vmem:[%s1028] ss:$8 sm:$0x3]
        %v1031 = vperm.slane %v1029, 0
        %v1032 = vperm.slane %v1029, 1
        %v1051 = vunpack.c.l.b16 %v1012
        %v1052 = vunpack.c.h.b16 %v1012
        %v1053 = vunpack.c.l.b16 %v1013
        %v1054 = vunpack.c.h.b16 %v1013
        %v1055 = vunpack.c.l.b16 %v1014
        %v1056 = vunpack.c.h.b16 %v1014
        %v1057 = vunpack.c.l.b16 %v1015
        %v1058 = vunpack.c.h.b16 %v1015
        %v1059 = vunpack.c.l.b16 %v1016
        %v1060 = vunpack.c.h.b16 %v1016
        %v1061 = vunpack.c.l.b16 %v1017
        %v1062 = vunpack.c.h.b16 %v1017
        %v1063 = vunpack.c.l.b16 %v1018
        %v1064 = vunpack.c.h.b16 %v1018
        %v1065 = vunpack.c.l.b16 %v1019
        %v1066 = vunpack.c.h.b16 %v1019
        %v1067 = vunpack.c.l.b16 %v1020
        %v1068 = vunpack.c.h.b16 %v1020
        %v1069 = vunpack.c.l.b16 %v1021
        %v1070 = vunpack.c.h.b16 %v1021
        %v1071 = vunpack.c.l.b16 %v1022
        %v1072 = vunpack.c.h.b16 %v1022
        %v1073 = vunpack.c.l.b16 %v1023
        %v1074 = vunpack.c.h.b16 %v1023
        %v1075 = vunpack.c.l.b16 %v1024
        %v1076 = vunpack.c.h.b16 %v1024
        %v1077 = vunpack.c.l.b16 %v1025
        %v1078 = vunpack.c.h.b16 %v1025
        %v1079 = vunpack.c.l.b16 %v1026
        %v1080 = vunpack.c.h.b16 %v1026
        %v1081 = vunpack.c.l.b16 %v1027
        %v1082 = vunpack.c.h.b16 %v1027
        %v1083 = vpack.c.b16 %v1053, %v1051
        %v1084 = vpack.c.b16 %v1054, %v1052
        %v1085 = vpack.c.b16 %v1057, %v1055
        %v1086 = vpack.c.b16 %v1058, %v1056
        %v1087 = vpack.c.b16 %v1061, %v1059
        %v1088 = vpack.c.b16 %v1062, %v1060
        %v1089 = vpack.c.b16 %v1065, %v1063
        %v1090 = vpack.c.b16 %v1066, %v1064
        %v1091 = vpack.c.b16 %v1069, %v1067
        %v1092 = vpack.c.b16 %v1070, %v1068
        %v1093 = vpack.c.b16 %v1073, %v1071
        %v1094 = vpack.c.b16 %v1074, %v1072
        %v1095 = vpack.c.b16 %v1077, %v1075
        %v1096 = vpack.c.b16 %v1078, %v1076
        %v1097 = vpack.c.b16 %v1081, %v1079
        %v1098 = vpack.c.b16 %v1082, %v1080
        %1115 = vmatpush.bf16.msra.mxu0 %v1097
        %1116 = vmatpush.bf16.msra.mxu0 %v1095
        %1117 = vmatpush.bf16.msra.mxu0 %v1093
        %1118 = vmatpush.bf16.msra.mxu0 %v1091
        %1119 = vmatpush.bf16.msra.mxu0 %v1089
        %1120 = vmatpush.bf16.msra.mxu0 %v1087
        %1121 = vmatpush.bf16.msra.mxu0 %v1085
        %1122 = vmatpush.bf16.msra.mxu0 %v1083
        %1123 = vmatmul.bf16.gmra.mxu0 %v1011
        %v1124 = vpop.f32.mrf.mxu0
        %v1125 = vadd.f32 %v1031, %v1124
        %v1126 = vpop.f32.mrf.mxu0
        %1127 = vdwg.mxu0
        %1128 = vmatpush.bf16.msra.mxu0 %v1098
        %1129 = vmatpush.bf16.msra.mxu0 %v1096
        %1130 = vmatpush.bf16.msra.mxu0 %v1094
        %1131 = vmatpush.bf16.msra.mxu0 %v1092
        %1132 = vmatpush.bf16.msra.mxu0 %v1090
        %1133 = vmatpush.bf16.msra.mxu0 %v1088
        %1134 = vmatpush.bf16.msra.mxu0 %v1086
        %1135 = vmatpush.bf16.msra.mxu0 %v1084
        %1136 = vmatmul.bf16.gmra.mxu0 %v1011
        %v1137 = vpop.f32.mrf.mxu0
        %v1138 = vadd.f32 %v1032, %v1137
        %v1139 = vpop.f32.mrf.mxu0
        %1140 = vdwg.mxu0
        %v1141 = vmax.f32 %v1138, 0.0
        %v1142 = vpack.c.bf16 %v1141, %v1141
        %v1143 = vld [vmem:[#allocation13] sm:$0xff]
        %v1144 = vld [vmem:[#allocation13 + $0x8] sm:$0xff]
        %v1145 = vld [vmem:[#allocation13 + $0x10] sm:$0xff]
        %v1146 = vld [vmem:[#allocation13 + $0x18] sm:$0xff]
        %s1147 = scalar_lea.vmem [#allocation16], 32
        %v1148 = vld [vmem:[%s1147] ss:$8 sm:$0x3]
        %v1150 = vperm.slane %v1148, 0
        %v1151 = vperm.slane %v1148, 1
        %v1158 = vunpack.c.l.b16 %v1143
        %v1159 = vunpack.c.h.b16 %v1143
        %v1160 = vunpack.c.l.b16 %v1144
        %v1161 = vunpack.c.h.b16 %v1144
        %v1162 = vunpack.c.l.b16 %v1145
        %v1163 = vunpack.c.h.b16 %v1145
        %v1164 = vunpack.c.l.b16 %v1146
        %v1165 = vunpack.c.h.b16 %v1146
        %v1166 = vpack.c.b16 %v1160, %v1158
        %v1167 = vpack.c.b16 %v1161, %v1159
        %v1168 = vpack.c.b16 %v1164, %v1162
        %v1169 = vpack.c.b16 %v1165, %v1163
        %v1175 = vsel %vm543, %v1142, 0
        %1177 = vmatpush.bf16.msra.mxu0 0
        %1178 = vmatpush.bf16.msra.mxu0 0
        %1179 = vmatpush.bf16.msra.mxu0 0
        %1180 = vmatpush.bf16.msra.mxu0 0
        %1181 = vmatpush.bf16.msra.mxu0 0
        %1182 = vmatpush.bf16.msra.mxu0 0
        %1183 = vmatpush.bf16.msra.mxu0 %v1168
        %1184 = vmatpush.bf16.msra.mxu0 %v1166
        %1185 = vmatmul.bf16.gmra.mxu0 %v1175
        %v1186 = vpop.f32.mrf.mxu0
        %v1187 = vadd.f32 %v1150, %v1186
        %v1188 = vpop.f32.mrf.mxu0
        %1189 = vdwg.mxu0
        %1190 = vmatpush.bf16.msra.mxu0 0
        %1191 = vmatpush.bf16.msra.mxu0 0
        %1192 = vmatpush.bf16.msra.mxu0 0
        %1193 = vmatpush.bf16.msra.mxu0 0
        %1194 = vmatpush.bf16.msra.mxu0 0
        %1195 = vmatpush.bf16.msra.mxu0 0
        %1196 = vmatpush.bf16.msra.mxu0 %v1169
        %1197 = vmatpush.bf16.msra.mxu0 %v1167
        %1198 = vmatmul.bf16.gmra.mxu0 %v1175
        %v1199 = vpop.f32.mrf.mxu0
        %v1200 = vadd.f32 %v1151, %v1199
        %v1201 = vpop.f32.mrf.mxu0
        %1202 = vdwg.mxu0
        %v1203 = vxor.u32 %v1200, 2147483648
        %v1204 = vmul.f32 %v1203, 1.442695
        %v1205 = vpow.pop %v1204
        %v1206 = vadd.f32 %v1205, 1.0
        %v1207 = vrcp.pop %v1206
        %v1208 = vmul.f32 %v1206, %v1207
        %v1209 = vsub.f32 1.0, %v1208
        %v1210 = vmul.f32 %v1207, %v1209
        %v1211 = vadd.f32 %v1207, %v1210
        %vm1212 = vweird.f32 %v1206
        %vm1213 = vweird.f32 %v1207
        %vm1214 = vmor %vm1212, %vm1213
        %v1215 = vsel %vm1214, %v1207, %v1211
        %v1216 = vand.u32 2147483647, %v1206
        %vm1217 = vcmp.eq.f32.partialorder %v1216, 8.507059e+37
        %v1218 = vand.u32 %v1206, 2147483648
        %v1219 = vor.u32 1.1754944e-38, %v1218
        %v1220 = vsel %vm1217, %v1219, %v1215
        %v1221 = vmul.f32 1.0, %v1220
        %v1222 = vmul.f32 %v1187, %v1221
        %v1223 = vadd.f32 %v1125, %v1222
        %v1224 = vsel %vm543, %v1223, 0.0
        %1225 = vadd.xlane.f32.xlu0 %v1224
        %v1226 = vpop.xlane.xlu0 %1225
        %v1227 = vrcp.pop 32.0
        %v1228 = vmul.f32 32.0, %v1227
        %v1229 = vsub.f32 1.0, %v1228
        %v1230 = vmul.f32 %v1227, %v1229
        %v1231 = vadd.f32 %v1227, %v1230
        %vm1232 = vweird.f32 %v1227
        %v1233 = vsel %vm1232, %v1227, %v1231
        %v1234 = vmul.f32 %v1226, %v1233
        %v1235 = vsub.f32 %v1223, %v1234
        %v1236 = vmul.f32 %v1235, %v1235
        %v1237 = vsel %vm543, %v1236, 0.0
        %1238 = vadd.xlane.f32.xlu0 %v1237
        %v1239 = vpop.xlane.xlu0 %1238
        %v1240 = vmul.f32 %v1239, %v1233
        %v1241 = vadd.f32 %v1240, 1e-05
        %v1242 = vrsqrt.pop %v1241
        %v1243 = vmul.f32 %v1242, %v1241
        %v1244 = vmul.f32 %v1243, %v1242
        %v1245 = vmul.f32 0.5, %v1244
        %v1246 = vsub.f32 1.5, %v1245
        %v1247 = vmul.f32 %v1242, %v1246
        %vm1248 = vweird.f32 %v1241
        %vm1249 = vweird.f32 %v1242
        %vm1250 = vmor %vm1248, %vm1249
        %v1251 = vsel %vm1250, %v1242, %v1247
        %v1252 = vmul.f32 %v1235, %v1251
        %v1253 = vpack.c.bf16 %v1252, %v1252
        %v1254 = vld [vmem:[#allocation14] sm:$0xf]
        %v1255 = vld [vmem:[#allocation14 + $0x4] sm:$0xf]
        %v1256 = vld [vmem:[#allocation14 + $0x8] sm:$0xf]
        %v1257 = vld [vmem:[#allocation14 + $0xc] sm:$0xf]
        %v1258 = vld [vmem:[#allocation14 + $0x10] sm:$0x3]
        %v1260 = vsel %vm993, %v1258, 0
        %1262 = vmatpush.bf16.msra.mxu0 0
        %1263 = vmatpush.bf16.msra.mxu0 0
        %1264 = vmatpush.bf16.msra.mxu0 0
        %1265 = vmatpush.bf16.msra.mxu0 0
        %1266 = vmatpush.bf16.msra.mxu0 0
        %1267 = vmatpush.bf16.msra.mxu0 0
        %1268 = vmatpush.bf16.msra.mxu0 0
        %1269 = vmatpush.bf16.msra.mxu0 %v1260
        %1270 = vmatmul.bf16.gmra.mxu0 %v991
        %v1271 = vpop.f32.mrf.mxu0
        %v1272 = vadd.f32 0.0, %v1271
        %v1273 = vpop.f32.mrf.mxu0
        %1274 = vdwg.mxu0
        %v1279 = vunpack.c.l.b16 %v1254
        %v1280 = vunpack.c.l.b16 %v1255
        %v1281 = vunpack.c.l.b16 %v1256
        %v1282 = vunpack.c.l.b16 %v1257
        %v1283 = vpack.c.b16 %v1280, %v1279
        %v1284 = vpack.c.b16 %v1282, %v1281
        %v1288 = vsel %vm543, %v1253, 0
        %1290 = vmatpush.bf16.msra.mxu0 0
        %1291 = vmatpush.bf16.msra.mxu0 0
        %1292 = vmatpush.bf16.msra.mxu0 0
        %1293 = vmatpush.bf16.msra.mxu0 0
        %1294 = vmatpush.bf16.msra.mxu0 0
        %1295 = vmatpush.bf16.msra.mxu0 0
        %1296 = vmatpush.bf16.msra.mxu0 %v1284
        %1297 = vmatpush.bf16.msra.mxu0 %v1283
        %1298 = vmatmul.bf16.gmra.mxu0 %v1288
        %v1299 = vpop.f32.mrf.mxu0
        %v1300 = vadd.f32 %v1272, %v1299
        %v1301 = vpop.f32.mrf.mxu0
        %1302 = vdwg.mxu0
        %v1303 = vld [vmem:[#allocation16 + $0x21] ss:$0 sm:$0xff]
        %v1304 = vadd.f32 %v1300, %v1303
        %1305 = vst [vmem:[%s481] sm:$0xff] %v1304
        %s1306 = sand.u32 %s232, 1
        %s1307 = scalar_lea.sflag [#allocation4], %s1306
        %s1308 = sand.u32 %s232, 1
        %s1309 = smul.addr %s1308, 8
        %s1310 = scalar_lea.vmem [#allocation17], %s1309
        // Predicated region
        $region93: #{tpu_custom_call.1} parent=55 // pred_check
          %p1311 = pneg %p242
        $region94: #{tpu_custom_call.1} parent=55 // pred_check_branch
          %1313 = sbr.rel (%p1311) target = $region96
        $region95: #{tpu_custom_call.1} parent=55 // pred_region
          %1315 = vsyncadd %s1307, 0
          %s1316 = smul.addr %s30, 8
          %s1317 = scalar_lea.hbm %s9, %s1316
          %s1319 = sshll.u32 %s1310, 4
          %s1320 = int_to_ptr.vmem [resolvable:$true] %s1319
          %s1321 = sshll.u32 %s1317, 4
          %s1322 = int_to_ptr.hbm [resolvable:$true] %s1321
          %1324 = dma.vmem_to_hbm [thread:$0]  %s1320, 128, %s1322, %s1307
        $region96: #{tpu_custom_call.1} parent=55 // pred_fallthru
          _
      $region56: #{tpu_custom_call.1} parent=5 // pred_fallthru
        _
      %p1325 = scmp.le.s32.totalorder 2, %s25
      // Predicated region
      $region97: #{tpu_custom_call.1} parent=5 // pred_check
        %p1326 = pneg %p1325
      $region98: #{tpu_custom_call.1} parent=5 // pred_check_branch
        %1328 = sbr.rel (%p1326) target = $region100
      $region99: #{tpu_custom_call.1} parent=5 // pred_region
        %s1329 = ssub.s32 %s25, 2
        // Predicated region
        $region101: #{tpu_custom_call.1} parent=99 // pred_check
          %p1330 = pneg %p248
        $region102: #{tpu_custom_call.1} parent=99 // pred_check_branch
          %1332 = sbr.rel (%p1330) target = $region104
        $region103: #{tpu_custom_call.1} parent=99 // pred_region
          %s1333 = sand.u32 %s233, 1
          %s1334 = scalar_lea.sflag [#allocation4], %s1333
          %s1335 = sand.u32 %s233, 1
          %s1336 = smul.addr %s1335, 8
          %s1337 = scalar_lea.vmem [#allocation17], %s1336
          %1339 = dma.done %s1334, 128
        $region104: #{tpu_custom_call.1} parent=99 // pred_fallthru
          _
      $region100: #{tpu_custom_call.1} parent=5 // pred_fallthru
        _
    $region6: #{tpu_custom_call.1} parent=1 // loop_footer
      %s29 = sadd.s32 1, %s25
    $region7: #{tpu_custom_call.1} parent=1 // loop_footer_branch
      %24 = sbr.rel target = $region3
    $region8: #{tpu_custom_call.1} parent=1 // loop_exit
      _
    %1340 = vsyncpa [#allocation3], 1
    %s1341 = scalar_lea.sflag [#allocation3], 1
    %1342 = vsyncpa %s1341, 1
    %1343 = vsyncpa [#allocation6], 1
    %1344 = vsyncpa [#allocation9], 1
    %1345 = vsyncpa [#allocation12], 1
    %1346 = vsyncpa [#allocation15], 1
    %1347 = vsyncpa [#allocation4], 1
    %s1348 = scalar_lea.sflag [#allocation4], 1
    %1349 = vsyncpa %s1348, 1

</llo_original>
